<compile_context>
chip_gen: v7x
topology: tpu7x:2x2x1
jax: 0.10.0
libtpu: 0.0.40
codegen_flags: <defaults>
</compile_context>

<pallas_src>
import functools

import jax
import jax.numpy as jnp
from jax.experimental import pallas as pl
from jax.experimental.pallas import tpu as pltpu

_LANE = 128      # lane width (last-dim alignment)
_SUBLANE = 8     # sublane height (second-minor alignment)
_F32 = 4         # bytes


def _round_up(v, m):
    return (v + m - 1) // m * m


def _gelu_exact(x):
    # PyTorch nn.GELU() default = exact erf-based GELU (kept exact to match
    # the spec; tanh-approx would move work from VALU to EUP but change numerics).
    return 0.5 * x * (1.0 + jax.lax.erf(x / jnp.sqrt(2.0).astype(x.dtype)))


def mixer_block_kernel(
    x_ref,         # (TB*Sp, Cp)  input slab: TB batches, rows flattened
    ts_scale_ref,  # (Sp, 1)      timestep-BN scale
    ts_shift_ref,  # (Sp, 1)      timestep-BN shift
    wt_ref,        # (Sp, Sp)     timestep linear weight (out, in)
    bt_ref,        # (Sp, 1)      timestep linear bias
    cs_scale_ref,  # (1, Cp)      channel-BN scale
    cs_shift_ref,  # (1, Cp)      channel-BN shift
    w1t_ref,       # (Cp, Mp)     channel linear1 weight, pre-transposed
    b1_ref,        # (1, Mp)
    w2t_ref,       # (Mp, Cp)     channel linear2 weight, pre-transposed
    b2_ref,        # (1, Cp)
    out_ref,       # (TB*Sp, Cp)
    t_ref,         # (TB*Sp, Cp)  f32 scratch: timestep-mixer residual output
    *, tb, sp,
):
    ts_scale = ts_scale_ref[...]
    ts_shift = ts_shift_ref[...]
    wt = wt_ref[...]
    bt = bt_ref[...]

    # ---------------- timesteps mixer (per batch inside the slab) -----------
    def mix_one(b, carry):
        r0 = pl.multiple_of(b * sp, sp)
        xb = x_ref[pl.ds(r0, sp), :].astype(jnp.float32)            # (Sp, Cp)
        yb = xb * ts_scale + ts_shift                               # BN(seq)
        mb = jnp.dot(wt, yb, preferred_element_type=jnp.float32)    # mix along S
        t_ref[pl.ds(r0, sp), :] = xb + _gelu_exact(mb + bt)         # residual
        return carry

    jax.lax.fori_loop(0, tb, mix_one, 0, unroll=(tb <= 8))

    # ---------------- channels mixer (whole slab, tall 128-aligned matmuls) --
    t = t_ref[...]                                                  # (TB*Sp, Cp)
    z = t * cs_scale_ref[...] + cs_shift_ref[...]                   # BN(channels)
    h = _gelu_exact(
        jnp.dot(z, w1t_ref[...], preferred_element_type=jnp.float32)
        + b1_ref[...])                                              # (TB*Sp, Mp)
    o = jnp.dot(h, w2t_ref[...], preferred_element_type=jnp.float32) + b2_ref[...]
    out_ref[...] = (t + o).astype(out_ref.dtype)                    # lane-dense store


def _choose_tb(B, Sp, Cp, Mp, itemsize,
               budget_bytes=44 * 2**20, min_tile_bytes=512 * 2**10):
    """Largest batch-tile TB (divisor of B) whose VMEM footprint fits a v7x-safe
    budget; prefer >=2 grid steps (dual TensorCore) only if tiles stay big."""
    weights = 2 * (Sp * Sp + 2 * Cp * Mp + 3 * Sp + Mp + 3 * Cp) * _F32

    def footprint(tb):
        rows = tb * Sp
        io = 2 * 2 * rows * Cp * itemsize        # x + out tiles, double-buffered
        scratch = rows * Cp * _F32               # t_ref
        live = rows * (2 * Cp + Mp) * _F32       # z / h / o working set
        return weights + io + scratch + live

    divisors = [d for d in range(1, B + 1) if B % d == 0]
    fitting = [d for d in divisors if footprint(d) <= budget_bytes]
    tb = max(fitting) if fitting else 1
    if B // tb < 2:
        alt = [d for d in fitting
               if B // d >= 2 and d * Sp * Cp * itemsize >= min_tile_bytes]
        if alt:
            tb = max(alt)
    return tb


def mixer_block(x, params):
    B, S, C = x.shape
    M = params["w1"].shape[0]
    eps = 1e-5

    Sp = _round_up(S, _SUBLANE)
    Cp = _round_up(C, _LANE)
    Mp = _round_up(M, _LANE)

    # ---- fold BatchNorm (eval-mode running stats) into scale/shift (JAX glue)
    ts_scale = params["bn_t_gamma"] / jnp.sqrt(params["bn_t_var"] + eps)
    ts_shift = params["bn_t_beta"] - params["bn_t_mean"] * ts_scale
    cs_scale = params["bn_c_gamma"] / jnp.sqrt(params["bn_c_var"] + eps)
    cs_shift = params["bn_c_beta"] - params["bn_c_mean"] * cs_scale

    def pad2(a, r, c):
        return jnp.pad(a, ((0, r - a.shape[0]), (0, c - a.shape[1])))

    # ---- zero-pad to lane/sublane-aligned shapes (no-op when already aligned)
    x_p = x
    if (Sp, Cp) != (S, C):
        x_p = jnp.pad(x, ((0, 0), (0, Sp - S), (0, Cp - C)))
    x2d = x_p.reshape(B * Sp, Cp)                 # lane-dense flattened slab

    args = (
        x2d,
        pad2(ts_scale.reshape(S, 1), Sp, 1),
        pad2(ts_shift.reshape(S, 1), Sp, 1),
        pad2(params["wt"], Sp, Sp),
        pad2(params["bt"].reshape(S, 1), Sp, 1),
        pad2(cs_scale.reshape(1, C), 1, Cp),
        pad2(cs_shift.reshape(1, C), 1, Cp),
        pad2(params["w1"].T, Cp, Mp),
        pad2(params["b1"].reshape(1, M), 1, Mp),
        pad2(params["w2"].T, Mp, Cp),
        pad2(params["b2"].reshape(1, C), 1, Cp),
    )

    itemsize = x.dtype.itemsize
    TB = _choose_tb(B, Sp, Cp, Mp, itemsize)
    rows = TB * Sp

    weight_bytes = (Sp * Sp + 2 * Cp * Mp + 3 * Sp + Mp + 3 * Cp) * _F32
    est_vmem = (2 * weight_bytes + 2 * 2 * rows * Cp * itemsize
                + rows * Cp * _F32 + rows * (2 * Cp + Mp) * _F32)
    vmem_limit = int(min(max(2 * est_vmem, 32 * 2**20), 60 * 2**20))

    cost = pl.CostEstimate(
        flops=int(2 * B * Sp * (Sp * Cp + 2 * Cp * Mp)),
        transcendentals=int(B * Sp * (Cp + Mp)),      # one erf per GELU element
        bytes_accessed=int(2 * B * Sp * Cp * itemsize + weight_bytes),
    )

    kernel = functools.partial(mixer_block_kernel, tb=TB, sp=Sp)
    out_shape = jax.ShapeDtypeStruct((B * Sp, Cp), x.dtype)

    def build_and_run(single_buffer_weights):
        extra = ({"pipeline_mode": pl.Buffered(1)}
                 if single_buffer_weights else {})

        def const_spec(shape):
            # grid-invariant operand: constant block index (DMA'd once)
            return pl.BlockSpec(shape, lambda i: (0, 0), **extra)

        grid_spec = pltpu.PrefetchScalarGridSpec(
            num_scalar_prefetch=0,
            grid=(B // TB,),
            in_specs=[
                pl.BlockSpec((rows, Cp), lambda i: (i, 0)),   # x slab (TB batches)
                const_spec((Sp, 1)), const_spec((Sp, 1)),     # ts BN scale/shift
                const_spec((Sp, Sp)), const_spec((Sp, 1)),    # W_t, b_t
                const_spec((1, Cp)), const_spec((1, Cp)),     # cs BN scale/shift
                const_spec((Cp, Mp)), const_spec((1, Mp)),    # W1^T, b1
                const_spec((Mp, Cp)), const_spec((1, Cp)),    # W2^T, b2
            ],
            out_specs=pl.BlockSpec((rows, Cp), lambda i: (i, 0)),
            scratch_shapes=[pltpu.VMEM((rows, Cp), jnp.float32)],
        )
        return pl.pallas_call(
            kernel,
            out_shape=out_shape,
            grid_spec=grid_spec,
            compiler_params=pltpu.CompilerParams(
                dimension_semantics=("parallel",),
                vmem_limit_bytes=vmem_limit,
            ),
            cost_estimate=cost,
        )(*args)

    try:
        out2d = build_and_run(True)    # single-buffer grid-invariant weights
    except Exception:
        # pl.Buffered(1) is a perf hint only; fall back to default buffering.
        out2d = build_and_run(False)

    out = out2d.reshape(B, Sp, Cp)
    if (Sp, Cp) != (S, C):
        out = out[:, :S, :C]
    return out


def mixer_block_reference(x, params):
    """Pure-JAX reference mirroring the PyTorch forward (eval mode)."""
    eps = 1e-5
    # timesteps mixer
    ts_scale = params["bn_t_gamma"] / jnp.sqrt(params["bn_t_var"] + eps)
    ts_shift = params["bn_t_beta"] - params["bn_t_mean"] * ts_scale
    y = x * ts_scale[None, :, None] + ts_shift[None, :, None]      # BN over S
    y = jnp.swapaxes(y, 1, 2)                                      # (B, C, S)
    y = y @ params["wt"].T + params["bt"]
    y = _gelu_exact(y)
    y = jnp.swapaxes(y, 1, 2)                                      # (B, S, C)
    t = x + y
    # channels mixer
    cs_scale = params["bn_c_gamma"] / jnp.sqrt(params["bn_c_var"] + eps)
    cs_shift = params["bn_c_beta"] - params["bn_c_mean"] * cs_scale
    z = t * cs_scale[None, None, :] + cs_shift[None, None, :]      # BN over C
    h = z @ params["w1"].T + params["b1"]
    h = _gelu_exact(h)
    o = h @ params["w2"].T + params["b2"]
    return t + o


def init_params(key, channels, mlp_dim, seq_len):
    ks = jax.random.split(key, 14)
    u = lambda k, shape, lim: jax.random.uniform(k, shape, jnp.float32, -lim, lim)
    return {
        # MlpBlockTimesteps
        "bn_t_gamma": 1.0 + 0.1 * jax.random.normal(ks[0], (seq_len,), jnp.float32),
        "bn_t_beta": 0.1 * jax.random.normal(ks[1], (seq_len,), jnp.float32),
        "bn_t_mean": 0.1 * jax.random.normal(ks[2], (seq_len,), jnp.float32),
        "bn_t_var": jnp.abs(1.0 + 0.1 * jax.random.normal(ks[3], (seq_len,), jnp.float32)),
        "wt": u(ks[4], (seq_len, seq_len), (1.0 / seq_len) ** 0.5),
        "bt": u(ks[5], (seq_len,), (1.0 / seq_len) ** 0.5),
        # MlpBlockFeatures
        "bn_c_gamma": 1.0 + 0.1 * jax.random.normal(ks[6], (channels,), jnp.float32),
        "bn_c_beta": 0.1 * jax.random.normal(ks[7], (channels,), jnp.float32),
        "bn_c_mean": 0.1 * jax.random.normal(ks[8], (channels,), jnp.float32),
        "bn_c_var": jnp.abs(1.0 + 0.1 * jax.random.normal(ks[9], (channels,), jnp.float32)),
        "w1": u(ks[10], (mlp_dim, channels), (1.0 / channels) ** 0.5),
        "b1": u(ks[11], (mlp_dim,), (1.0 / channels) ** 0.5),
        "w2": u(ks[12], (channels, mlp_dim), (1.0 / mlp_dim) ** 0.5),
        "b2": u(ks[13], (channels,), (1.0 / mlp_dim) ** 0.5),
    }


if __name__ == "__main__":
    B, S, C, M = 2, 8, 16, 32   # batch, seq_len, channels, features_block_mlp_dims
    key = jax.random.PRNGKey(0)
    kx, kp = jax.random.split(key)
    x = jax.random.normal(kx, (B, S, C), jnp.float32)
    params = init_params(kp, channels=C, mlp_dim=M, seq_len=S)

    out = mixer_block(x, params)
    out = jax.block_until_ready(out)

    ref = mixer_block_reference(x, params)
    assert out.shape == (B, S, C)
    assert jnp.allclose(out, ref, atol=1e-4, rtol=1e-4), "mismatch vs reference"
    print("KERNEL_OK")
</pallas_src>

<mosaic_0001>
module attributes {stable_mosaic.version = 11 : i64} {
  func.func @mixer_block_kernel(%arg0: i32, %arg1: memref<16x128xf32, #tpu.memory_space<vmem>>, %arg2: memref<8x1xf32, #tpu.memory_space<vmem>>, %arg3: memref<8x1xf32, #tpu.memory_space<vmem>>, %arg4: memref<8x8xf32, #tpu.memory_space<vmem>>, %arg5: memref<8x1xf32, #tpu.memory_space<vmem>>, %arg6: memref<1x128xf32, #tpu.memory_space<vmem>>, %arg7: memref<1x128xf32, #tpu.memory_space<vmem>>, %arg8: memref<128x128xf32, #tpu.memory_space<vmem>>, %arg9: memref<1x128xf32, #tpu.memory_space<vmem>>, %arg10: memref<128x128xf32, #tpu.memory_space<vmem>>, %arg11: memref<1x128xf32, #tpu.memory_space<vmem>>, %arg12: memref<16x128xf32, #tpu.memory_space<vmem>>, %arg13: memref<16x128xf32, #tpu.memory_space<vmem>>) attributes {dimension_semantics = [#tpu.dimension_semantics<parallel>], iteration_bounds = array<i64: 1>, scalar_prefetch = 0 : i64, scratch_operands = 1 : i64, tpu.core_type = #tpu.core_type<tc>, window_params = [{transform_indices = @transform_0, window_bounds = array<i64: 16, 128>}, {pipeline_mode = #tpu.pipeline_mode<synchronous>, transform_indices = @transform_1, window_bounds = array<i64: 8, 1>}, {pipeline_mode = #tpu.pipeline_mode<synchronous>, transform_indices = @transform_2, window_bounds = array<i64: 8, 1>}, {pipeline_mode = #tpu.pipeline_mode<synchronous>, transform_indices = @transform_3, window_bounds = array<i64: 8, 8>}, {pipeline_mode = #tpu.pipeline_mode<synchronous>, transform_indices = @transform_4, window_bounds = array<i64: 8, 1>}, {pipeline_mode = #tpu.pipeline_mode<synchronous>, transform_indices = @transform_5, window_bounds = array<i64: 1, 128>}, {pipeline_mode = #tpu.pipeline_mode<synchronous>, transform_indices = @transform_6, window_bounds = array<i64: 1, 128>}, {pipeline_mode = #tpu.pipeline_mode<synchronous>, transform_indices = @transform_7, window_bounds = array<i64: 128, 128>}, {pipeline_mode = #tpu.pipeline_mode<synchronous>, transform_indices = @transform_8, window_bounds = array<i64: 1, 128>}, {pipeline_mode = #tpu.pipeline_mode<synchronous>, transform_indices = @transform_9, window_bounds = array<i64: 128, 128>}, {pipeline_mode = #tpu.pipeline_mode<synchronous>, transform_indices = @transform_10, window_bounds = array<i64: 1, 128>}, {transform_indices = @transform_11, window_bounds = array<i64: 16, 128>}]} {
    %c0 = arith.constant 0 : index
    %c0_0 = arith.constant 0 : index
    %0 = vector.load %arg2[%c0, %c0_0] : memref<8x1xf32, #tpu.memory_space<vmem>>, vector<8x1xf32>
    %c0_1 = arith.constant 0 : index
    %c0_2 = arith.constant 0 : index
    %1 = vector.load %arg3[%c0_1, %c0_2] : memref<8x1xf32, #tpu.memory_space<vmem>>, vector<8x1xf32>
    %c0_3 = arith.constant 0 : index
    %c0_4 = arith.constant 0 : index
    %2 = vector.load %arg4[%c0_3, %c0_4] : memref<8x8xf32, #tpu.memory_space<vmem>>, vector<8x8xf32>
    %c0_5 = arith.constant 0 : index
    %c0_6 = arith.constant 0 : index
    %3 = vector.load %arg5[%c0_5, %c0_6] : memref<8x1xf32, #tpu.memory_space<vmem>>, vector<8x1xf32>
    %c0_i32 = arith.constant 0 : i32
    %c8_i32 = arith.constant 8 : i32
    %4 = arith.muli %c0_i32, %c8_i32 : i32
    %5 = tpu.assume_multiple %4, 8 : i32
    %6 = arith.index_cast %5 : i32 to index
    %c0_7 = arith.constant 0 : index
    %7 = vector.load %arg1[%6, %c0_7] : memref<16x128xf32, #tpu.memory_space<vmem>>, vector<8x128xf32>
    %8 = vector.broadcast %0 : vector<8x1xf32> to vector<8x128xf32>
    %9 = arith.mulf %7, %8 : vector<8x128xf32>
    %10 = vector.broadcast %1 : vector<8x1xf32> to vector<8x128xf32>
    %11 = arith.addf %9, %10 : vector<8x128xf32>
    %cst = arith.constant dense<0.000000e+00> : vector<8x128xf32>
    %12 = tpu.matmul %2, %11, %cst {dimension_numbers = #tpu.dot_dimension_numbers<[1], [0], [0], [1], [0, 0, 1, 1], [], []>} : vector<8x8xf32>, vector<8x128xf32>, vector<8x128xf32> -> vector<8x128xf32>
    %13 = vector.broadcast %3 : vector<8x1xf32> to vector<8x128xf32>
    %14 = arith.addf %12, %13 : vector<8x128xf32>
    %cst_8 = arith.constant 5.000000e-01 : f32
    %15 = vector.broadcast %cst_8 : f32 to vector<8x128xf32>
    %16 = arith.mulf %15, %14 : vector<8x128xf32>
    %cst_9 = arith.constant 2.000000e+00 : f32
    %17 = math.sqrt %cst_9 : f32
    %18 = vector.broadcast %17 : f32 to vector<8x128xf32>
    %19 = arith.divf %14, %18 : vector<8x128xf32>
    %20 = math.erf %19 : vector<8x128xf32>
    %cst_10 = arith.constant 1.000000e+00 : f32
    %21 = vector.broadcast %cst_10 : f32 to vector<8x128xf32>
    %22 = arith.addf %21, %20 : vector<8x128xf32>
    %23 = arith.mulf %16, %22 : vector<8x128xf32>
    %24 = arith.addf %7, %23 : vector<8x128xf32>
    %25 = arith.index_cast %5 : i32 to index
    %c0_11 = arith.constant 0 : index
    %26 = vector.load %arg13[%25, %c0_11] : memref<16x128xf32, #tpu.memory_space<vmem>>, vector<8x128xf32>
    tpu.vector_store %arg13[%25, %c0_11], %24 {strides = array<i32>} : memref<16x128xf32, #tpu.memory_space<vmem>>, vector<8x128xf32>,
    %c1_i32 = arith.constant 1 : i32
    %c8_i32_12 = arith.constant 8 : i32
    %27 = arith.muli %c1_i32, %c8_i32_12 : i32
    %28 = tpu.assume_multiple %27, 8 : i32
    %29 = arith.index_cast %28 : i32 to index
    %c0_13 = arith.constant 0 : index
    %30 = vector.load %arg1[%29, %c0_13] : memref<16x128xf32, #tpu.memory_space<vmem>>, vector<8x128xf32>
    %31 = vector.broadcast %0 : vector<8x1xf32> to vector<8x128xf32>
    %32 = arith.mulf %30, %31 : vector<8x128xf32>
    %33 = vector.broadcast %1 : vector<8x1xf32> to vector<8x128xf32>
    %34 = arith.addf %32, %33 : vector<8x128xf32>
    %cst_14 = arith.constant dense<0.000000e+00> : vector<8x128xf32>
    %35 = tpu.matmul %2, %34, %cst_14 {dimension_numbers = #tpu.dot_dimension_numbers<[1], [0], [0], [1], [0, 0, 1, 1], [], []>} : vector<8x8xf32>, vector<8x128xf32>, vector<8x128xf32> -> vector<8x128xf32>
    %36 = vector.broadcast %3 : vector<8x1xf32> to vector<8x128xf32>
    %37 = arith.addf %35, %36 : vector<8x128xf32>
    %cst_15 = arith.constant 5.000000e-01 : f32
    %38 = vector.broadcast %cst_15 : f32 to vector<8x128xf32>
    %39 = arith.mulf %38, %37 : vector<8x128xf32>
    %cst_16 = arith.constant 2.000000e+00 : f32
    %40 = math.sqrt %cst_16 : f32
    %41 = vector.broadcast %40 : f32 to vector<8x128xf32>
    %42 = arith.divf %37, %41 : vector<8x128xf32>
    %43 = math.erf %42 : vector<8x128xf32>
    %cst_17 = arith.constant 1.000000e+00 : f32
    %44 = vector.broadcast %cst_17 : f32 to vector<8x128xf32>
    %45 = arith.addf %44, %43 : vector<8x128xf32>
    %46 = arith.mulf %39, %45 : vector<8x128xf32>
    %47 = arith.addf %30, %46 : vector<8x128xf32>
    %48 = arith.index_cast %28 : i32 to index
    %c0_18 = arith.constant 0 : index
    %49 = vector.load %arg13[%48, %c0_18] : memref<16x128xf32, #tpu.memory_space<vmem>>, vector<8x128xf32>
    tpu.vector_store %arg13[%48, %c0_18], %47 {strides = array<i32>} : memref<16x128xf32, #tpu.memory_space<vmem>>, vector<8x128xf32>,
    %c2_i32 = arith.constant 2 : i32
    %c0_19 = arith.constant 0 : index
    %c0_20 = arith.constant 0 : index
    %50 = vector.load %arg13[%c0_19, %c0_20] : memref<16x128xf32, #tpu.memory_space<vmem>>, vector<16x128xf32>
    %c0_21 = arith.constant 0 : index
    %c0_22 = arith.constant 0 : index
    %51 = vector.load %arg6[%c0_21, %c0_22] : memref<1x128xf32, #tpu.memory_space<vmem>>, vector<1x128xf32>
    %52 = vector.broadcast %51 : vector<1x128xf32> to vector<16x128xf32>
    %53 = arith.mulf %50, %52 : vector<16x128xf32>
    %c0_23 = arith.constant 0 : index
    %c0_24 = arith.constant 0 : index
    %54 = vector.load %arg7[%c0_23, %c0_24] : memref<1x128xf32, #tpu.memory_space<vmem>>, vector<1x128xf32>
    %55 = vector.broadcast %54 : vector<1x128xf32> to vector<16x128xf32>
    %56 = arith.addf %53, %55 : vector<16x128xf32>
    %c0_25 = arith.constant 0 : index
    %c0_26 = arith.constant 0 : index
    %57 = vector.load %arg8[%c0_25, %c0_26] : memref<128x128xf32, #tpu.memory_space<vmem>>, vector<128x128xf32>
    %cst_27 = arith.constant dense<0.000000e+00> : vector<16x128xf32>
    %58 = tpu.matmul %56, %57, %cst_27 {dimension_numbers = #tpu.dot_dimension_numbers<[1], [0], [0], [1], [0, 0, 1, 1], [], []>} : vector<16x128xf32>, vector<128x128xf32>, vector<16x128xf32> -> vector<16x128xf32>
    %c0_28 = arith.constant 0 : index
    %c0_29 = arith.constant 0 : index
    %59 = vector.load %arg9[%c0_28, %c0_29] : memref<1x128xf32, #tpu.memory_space<vmem>>, vector<1x128xf32>
    %60 = vector.broadcast %59 : vector<1x128xf32> to vector<16x128xf32>
    %61 = arith.addf %58, %60 : vector<16x128xf32>
    %cst_30 = arith.constant 5.000000e-01 : f32
    %62 = vector.broadcast %cst_30 : f32 to vector<16x128xf32>
    %63 = arith.mulf %62, %61 : vector<16x128xf32>
    %cst_31 = arith.constant 2.000000e+00 : f32
    %64 = math.sqrt %cst_31 : f32
    %65 = vector.broadcast %64 : f32 to vector<16x128xf32>
    %66 = arith.divf %61, %65 : vector<16x128xf32>
    %67 = math.erf %66 : vector<16x128xf32>
    %cst_32 = arith.constant 1.000000e+00 : f32
    %68 = vector.broadcast %cst_32 : f32 to vector<16x128xf32>
    %69 = arith.addf %68, %67 : vector<16x128xf32>
    %70 = arith.mulf %63, %69 : vector<16x128xf32>
    %c0_33 = arith.constant 0 : index
    %c0_34 = arith.constant 0 : index
    %71 = vector.load %arg10[%c0_33, %c0_34] : memref<128x128xf32, #tpu.memory_space<vmem>>, vector<128x128xf32>
    %cst_35 = arith.constant dense<0.000000e+00> : vector<16x128xf32>
    %72 = tpu.matmul %70, %71, %cst_35 {dimension_numbers = #tpu.dot_dimension_numbers<[1], [0], [0], [1], [0, 0, 1, 1], [], []>} : vector<16x128xf32>, vector<128x128xf32>, vector<16x128xf32> -> vector<16x128xf32>
    %c0_36 = arith.constant 0 : index
    %c0_37 = arith.constant 0 : index
    %73 = vector.load %arg11[%c0_36, %c0_37] : memref<1x128xf32, #tpu.memory_space<vmem>>, vector<1x128xf32>
    %74 = vector.broadcast %73 : vector<1x128xf32> to vector<16x128xf32>
    %75 = arith.addf %72, %74 : vector<16x128xf32>
    %76 = arith.addf %50, %75 : vector<16x128xf32>
    %c0_38 = arith.constant 0 : index
    %c0_39 = arith.constant 0 : index
    %77 = vector.load %arg12[%c0_38, %c0_39] : memref<16x128xf32, #tpu.memory_space<vmem>>, vector<16x128xf32>
    tpu.vector_store %arg12[%c0_38, %c0_39], %76 {strides = array<i32>} : memref<16x128xf32, #tpu.memory_space<vmem>>, vector<16x128xf32>,
    return
  }
  func.func @transform_0(%arg0: i32) -> (i32, i32) {
    %c0_i32 = arith.constant 0 : i32
    %c0_i32_0 = arith.constant 0 : i32
    return %arg0, %c0_i32 : i32, i32
  }
  func.func @transform_1(%arg0: i32) -> (i32, i32) {
    %c0_i32 = arith.constant 0 : i32
    %c0_i32_0 = arith.constant 0 : i32
    %c0_i32_1 = arith.constant 0 : i32
    return %c0_i32, %c0_i32_0 : i32, i32
  }
  func.func @transform_2(%arg0: i32) -> (i32, i32) {
    %c0_i32 = arith.constant 0 : i32
    %c0_i32_0 = arith.constant 0 : i32
    %c0_i32_1 = arith.constant 0 : i32
    return %c0_i32, %c0_i32_0 : i32, i32
  }
  func.func @transform_3(%arg0: i32) -> (i32, i32) {
    %c0_i32 = arith.constant 0 : i32
    %c0_i32_0 = arith.constant 0 : i32
    %c0_i32_1 = arith.constant 0 : i32
    return %c0_i32, %c0_i32_0 : i32, i32
  }
  func.func @transform_4(%arg0: i32) -> (i32, i32) {
    %c0_i32 = arith.constant 0 : i32
    %c0_i32_0 = arith.constant 0 : i32
    %c0_i32_1 = arith.constant 0 : i32
    return %c0_i32, %c0_i32_0 : i32, i32
  }
  func.func @transform_5(%arg0: i32) -> (i32, i32) {
    %c0_i32 = arith.constant 0 : i32
    %c0_i32_0 = arith.constant 0 : i32
    %c0_i32_1 = arith.constant 0 : i32
    return %c0_i32, %c0_i32_0 : i32, i32
  }
  func.func @transform_6(%arg0: i32) -> (i32, i32) {
    %c0_i32 = arith.constant 0 : i32
    %c0_i32_0 = arith.constant 0 : i32
    %c0_i32_1 = arith.constant 0 : i32
    return %c0_i32, %c0_i32_0 : i32, i32
  }
  func.func @transform_7(%arg0: i32) -> (i32, i32) {
    %c0_i32 = arith.constant 0 : i32
    %c0_i32_0 = arith.constant 0 : i32
    %c0_i32_1 = arith.constant 0 : i32
    return %c0_i32, %c0_i32_0 : i32, i32
  }
  func.func @transform_8(%arg0: i32) -> (i32, i32) {
    %c0_i32 = arith.constant 0 : i32
    %c0_i32_0 = arith.constant 0 : i32
    %c0_i32_1 = arith.constant 0 : i32
    return %c0_i32, %c0_i32_0 : i32, i32
  }
  func.func @transform_9(%arg0: i32) -> (i32, i32) {
    %c0_i32 = arith.constant 0 : i32
    %c0_i32_0 = arith.constant 0 : i32
    %c0_i32_1 = arith.constant 0 : i32
    return %c0_i32, %c0_i32_0 : i32, i32
  }
  func.func @transform_10(%arg0: i32) -> (i32, i32) {
    %c0_i32 = arith.constant 0 : i32
    %c0_i32_0 = arith.constant 0 : i32
    %c0_i32_1 = arith.constant 0 : i32
    return %c0_i32, %c0_i32_0 : i32, i32
  }
  func.func @transform_11(%arg0: i32) -> (i32, i32) {
    %c0_i32 = arith.constant 0 : i32
    %c0_i32_0 = arith.constant 0 : i32
    return %arg0, %c0_i32 : i32, i32
  }
}

module attributes {stable_mosaic.version = 11 : i64} {
  func.func @mixer_block_kernel(%arg0: i32, %arg1: memref<16x128xf32, #tpu.memory_space<vmem>>, %arg2: memref<8x1xf32, #tpu.memory_space<vmem>>, %arg3: memref<8x1xf32, #tpu.memory_space<vmem>>, %arg4: memref<8x8xf32, #tpu.memory_space<vmem>>, %arg5: memref<8x1xf32, #tpu.memory_space<vmem>>, %arg6: memref<1x128xf32, #tpu.memory_space<vmem>>, %arg7: memref<1x128xf32, #tpu.memory_space<vmem>>, %arg8: memref<128x128xf32, #tpu.memory_space<vmem>>, %arg9: memref<1x128xf32, #tpu.memory_space<vmem>>, %arg10: memref<128x128xf32, #tpu.memory_space<vmem>>, %arg11: memref<1x128xf32, #tpu.memory_space<vmem>>, %arg12: memref<16x128xf32, #tpu.memory_space<vmem>>, %arg13: memref<16x128xf32, #tpu.memory_space<vmem>>) attributes {dimension_semantics = [#tpu.dimension_semantics<parallel>], iteration_bounds = array<i64: 1>, scalar_prefetch = 0 : i64, scratch_operands = 1 : i64, tpu.core_type = #tpu.core_type<tc>, window_params = [{transform_indices = @transform_0, window_bounds = array<i64: 16, 128>}, {pipeline_mode = #tpu.pipeline_mode<synchronous>, transform_indices = @transform_1, window_bounds = array<i64: 8, 1>}, {pipeline_mode = #tpu.pipeline_mode<synchronous>, transform_indices = @transform_2, window_bounds = array<i64: 8, 1>}, {pipeline_mode = #tpu.pipeline_mode<synchronous>, transform_indices = @transform_3, window_bounds = array<i64: 8, 8>}, {pipeline_mode = #tpu.pipeline_mode<synchronous>, transform_indices = @transform_4, window_bounds = array<i64: 8, 1>}, {pipeline_mode = #tpu.pipeline_mode<synchronous>, transform_indices = @transform_5, window_bounds = array<i64: 1, 128>}, {pipeline_mode = #tpu.pipeline_mode<synchronous>, transform_indices = @transform_6, window_bounds = array<i64: 1, 128>}, {pipeline_mode = #tpu.pipeline_mode<synchronous>, transform_indices = @transform_7, window_bounds = array<i64: 128, 128>}, {pipeline_mode = #tpu.pipeline_mode<synchronous>, transform_indices = @transform_8, window_bounds = array<i64: 1, 128>}, {pipeline_mode = #tpu.pipeline_mode<synchronous>, transform_indices = @transform_9, window_bounds = array<i64: 128, 128>}, {pipeline_mode = #tpu.pipeline_mode<synchronous>, transform_indices = @transform_10, window_bounds = array<i64: 1, 128>}, {transform_indices = @transform_11, window_bounds = array<i64: 16, 128>}]} {
    %c0 = arith.constant 0 : index
    %c0_0 = arith.constant 0 : index
    %0 = vector.load %arg2[%c0, %c0_0] : memref<8x1xf32, #tpu.memory_space<vmem>>, vector<8x1xf32>
    %c0_1 = arith.constant 0 : index
    %c0_2 = arith.constant 0 : index
    %1 = vector.load %arg3[%c0_1, %c0_2] : memref<8x1xf32, #tpu.memory_space<vmem>>, vector<8x1xf32>
    %c0_3 = arith.constant 0 : index
    %c0_4 = arith.constant 0 : index
    %2 = vector.load %arg4[%c0_3, %c0_4] : memref<8x8xf32, #tpu.memory_space<vmem>>, vector<8x8xf32>
    %c0_5 = arith.constant 0 : index
    %c0_6 = arith.constant 0 : index
    %3 = vector.load %arg5[%c0_5, %c0_6] : memref<8x1xf32, #tpu.memory_space<vmem>>, vector<8x1xf32>
    %c0_i32 = arith.constant 0 : i32
    %c8_i32 = arith.constant 8 : i32
    %4 = arith.muli %c0_i32, %c8_i32 : i32
    %5 = tpu.assume_multiple %4, 8 : i32
    %6 = arith.index_cast %5 : i32 to index
    %c0_7 = arith.constant 0 : index
    %7 = vector.load %arg1[%6, %c0_7] : memref<16x128xf32, #tpu.memory_space<vmem>>, vector<8x128xf32>
    %8 = vector.broadcast %0 : vector<8x1xf32> to vector<8x128xf32>
    %9 = arith.mulf %7, %8 : vector<8x128xf32>
    %10 = vector.broadcast %1 : vector<8x1xf32> to vector<8x128xf32>
    %11 = arith.addf %9, %10 : vector<8x128xf32>
    %cst = arith.constant dense<0.000000e+00> : vector<8x128xf32>
    %12 = tpu.matmul %2, %11, %cst {dimension_numbers = #tpu.dot_dimension_numbers<[1], [0], [0], [1], [0, 0, 1, 1], [], []>} : vector<8x8xf32>, vector<8x128xf32>, vector<8x128xf32> -> vector<8x128xf32>
    %13 = vector.broadcast %3 : vector<8x1xf32> to vector<8x128xf32>
    %14 = arith.addf %12, %13 : vector<8x128xf32>
    %cst_8 = arith.constant 5.000000e-01 : f32
    %15 = vector.broadcast %cst_8 : f32 to vector<8x128xf32>
    %16 = arith.mulf %15, %14 : vector<8x128xf32>
    %cst_9 = arith.constant 2.000000e+00 : f32
    %17 = math.sqrt %cst_9 : f32
    %18 = vector.broadcast %17 : f32 to vector<8x128xf32>
    %19 = arith.divf %14, %18 : vector<8x128xf32>
    %20 = math.erf %19 : vector<8x128xf32>
    %cst_10 = arith.constant 1.000000e+00 : f32
    %21 = vector.broadcast %cst_10 : f32 to vector<8x128xf32>
    %22 = arith.addf %21, %20 : vector<8x128xf32>
    %23 = arith.mulf %16, %22 : vector<8x128xf32>
    %24 = arith.addf %7, %23 : vector<8x128xf32>
    %25 = arith.index_cast %5 : i32 to index
    %c0_11 = arith.constant 0 : index
    %26 = vector.load %arg13[%25, %c0_11] : memref<16x128xf32, #tpu.memory_space<vmem>>, vector<8x128xf32>
    tpu.vector_store %arg13[%25, %c0_11], %24 {strides = array<i32>} : memref<16x128xf32, #tpu.memory_space<vmem>>, vector<8x128xf32>,
    %c1_i32 = arith.constant 1 : i32
    %c8_i32_12 = arith.constant 8 : i32
    %27 = arith.muli %c1_i32, %c8_i32_12 : i32
    %28 = tpu.assume_multiple %27, 8 : i32
    %29 = arith.index_cast %28 : i32 to index
    %c0_13 = arith.constant 0 : index
    %30 = vector.load %arg1[%29, %c0_13] : memref<16x128xf32, #tpu.memory_space<vmem>>, vector<8x128xf32>
    %31 = vector.broadcast %0 : vector<8x1xf32> to vector<8x128xf32>
    %32 = arith.mulf %30, %31 : vector<8x128xf32>
    %33 = vector.broadcast %1 : vector<8x1xf32> to vector<8x128xf32>
    %34 = arith.addf %32, %33 : vector<8x128xf32>
    %cst_14 = arith.constant dense<0.000000e+00> : vector<8x128xf32>
    %35 = tpu.matmul %2, %34, %cst_14 {dimension_numbers = #tpu.dot_dimension_numbers<[1], [0], [0], [1], [0, 0, 1, 1], [], []>} : vector<8x8xf32>, vector<8x128xf32>, vector<8x128xf32> -> vector<8x128xf32>
    %36 = vector.broadcast %3 : vector<8x1xf32> to vector<8x128xf32>
    %37 = arith.addf %35, %36 : vector<8x128xf32>
    %cst_15 = arith.constant 5.000000e-01 : f32
    %38 = vector.broadcast %cst_15 : f32 to vector<8x128xf32>
    %39 = arith.mulf %38, %37 : vector<8x128xf32>
    %cst_16 = arith.constant 2.000000e+00 : f32
    %40 = math.sqrt %cst_16 : f32
    %41 = vector.broadcast %40 : f32 to vector<8x128xf32>
    %42 = arith.divf %37, %41 : vector<8x128xf32>
    %43 = math.erf %42 : vector<8x128xf32>
    %cst_17 = arith.constant 1.000000e+00 : f32
    %44 = vector.broadcast %cst_17 : f32 to vector<8x128xf32>
    %45 = arith.addf %44, %43 : vector<8x128xf32>
    %46 = arith.mulf %39, %45 : vector<8x128xf32>
    %47 = arith.addf %30, %46 : vector<8x128xf32>
    %48 = arith.index_cast %28 : i32 to index
    %c0_18 = arith.constant 0 : index
    %49 = vector.load %arg13[%48, %c0_18] : memref<16x128xf32, #tpu.memory_space<vmem>>, vector<8x128xf32>
    tpu.vector_store %arg13[%48, %c0_18], %47 {strides = array<i32>} : memref<16x128xf32, #tpu.memory_space<vmem>>, vector<8x128xf32>,
    %c2_i32 = arith.constant 2 : i32
    %c0_19 = arith.constant 0 : index
    %c0_20 = arith.constant 0 : index
    %50 = vector.load %arg13[%c0_19, %c0_20] : memref<16x128xf32, #tpu.memory_space<vmem>>, vector<16x128xf32>
    %c0_21 = arith.constant 0 : index
    %c0_22 = arith.constant 0 : index
    %51 = vector.load %arg6[%c0_21, %c0_22] : memref<1x128xf32, #tpu.memory_space<vmem>>, vector<1x128xf32>
    %52 = vector.broadcast %51 : vector<1x128xf32> to vector<16x128xf32>
    %53 = arith.mulf %50, %52 : vector<16x128xf32>
    %c0_23 = arith.constant 0 : index
    %c0_24 = arith.constant 0 : index
    %54 = vector.load %arg7[%c0_23, %c0_24] : memref<1x128xf32, #tpu.memory_space<vmem>>, vector<1x128xf32>
    %55 = vector.broadcast %54 : vector<1x128xf32> to vector<16x128xf32>
    %56 = arith.addf %53, %55 : vector<16x128xf32>
    %c0_25 = arith.constant 0 : index
    %c0_26 = arith.constant 0 : index
    %57 = vector.load %arg8[%c0_25, %c0_26] : memref<128x128xf32, #tpu.memory_space<vmem>>, vector<128x128xf32>
    %cst_27 = arith.constant dense<0.000000e+00> : vector<16x128xf32>
    %58 = tpu.matmul %56, %57, %cst_27 {dimension_numbers = #tpu.dot_dimension_numbers<[1], [0], [0], [1], [0, 0, 1, 1], [], []>} : vector<16x128xf32>, vector<128x128xf32>, vector<16x128xf32> -> vector<16x128xf32>
    %c0_28 = arith.constant 0 : index
    %c0_29 = arith.constant 0 : index
    %59 = vector.load %arg9[%c0_28, %c0_29] : memref<1x128xf32, #tpu.memory_space<vmem>>, vector<1x128xf32>
    %60 = vector.broadcast %59 : vector<1x128xf32> to vector<16x128xf32>
    %61 = arith.addf %58, %60 : vector<16x128xf32>
    %cst_30 = arith.constant 5.000000e-01 : f32
    %62 = vector.broadcast %cst_30 : f32 to vector<16x128xf32>
    %63 = arith.mulf %62, %61 : vector<16x128xf32>
    %cst_31 = arith.constant 2.000000e+00 : f32
    %64 = math.sqrt %cst_31 : f32
    %65 = vector.broadcast %64 : f32 to vector<16x128xf32>
    %66 = arith.divf %61, %65 : vector<16x128xf32>
    %67 = math.erf %66 : vector<16x128xf32>
    %cst_32 = arith.constant 1.000000e+00 : f32
    %68 = vector.broadcast %cst_32 : f32 to vector<16x128xf32>
    %69 = arith.addf %68, %67 : vector<16x128xf32>
    %70 = arith.mulf %63, %69 : vector<16x128xf32>
    %c0_33 = arith.constant 0 : index
    %c0_34 = arith.constant 0 : index
    %71 = vector.load %arg10[%c0_33, %c0_34] : memref<128x128xf32, #tpu.memory_space<vmem>>, vector<128x128xf32>
    %cst_35 = arith.constant dense<0.000000e+00> : vector<16x128xf32>
    %72 = tpu.matmul %70, %71, %cst_35 {dimension_numbers = #tpu.dot_dimension_numbers<[1], [0], [0], [1], [0, 0, 1, 1], [], []>} : vector<16x128xf32>, vector<128x128xf32>, vector<16x128xf32> -> vector<16x128xf32>
    %c0_36 = arith.constant 0 : index
    %c0_37 = arith.constant 0 : index
    %73 = vector.load %arg11[%c0_36, %c0_37] : memref<1x128xf32, #tpu.memory_space<vmem>>, vector<1x128xf32>
    %74 = vector.broadcast %73 : vector<1x128xf32> to vector<16x128xf32>
    %75 = arith.addf %72, %74 : vector<16x128xf32>
    %76 = arith.addf %50, %75 : vector<16x128xf32>
    %c0_38 = arith.constant 0 : index
    %c0_39 = arith.constant 0 : index
    %77 = vector.load %arg12[%c0_38, %c0_39] : memref<16x128xf32, #tpu.memory_space<vmem>>, vector<16x128xf32>
    tpu.vector_store %arg12[%c0_38, %c0_39], %76 {strides = array<i32>} : memref<16x128xf32, #tpu.memory_space<vmem>>, vector<16x128xf32>,
    return
  }
  func.func @transform_0(%arg0: i32) -> (i32, i32) {
    %c0_i32 = arith.constant 0 : i32
    %c0_i32_0 = arith.constant 0 : i32
    return %arg0, %c0_i32 : i32, i32
  }
  func.func @transform_1(%arg0: i32) -> (i32, i32) {
    %c0_i32 = arith.constant 0 : i32
    %c0_i32_0 = arith.constant 0 : i32
    %c0_i32_1 = arith.constant 0 : i32
    return %c0_i32, %c0_i32_0 : i32, i32
  }
  func.func @transform_2(%arg0: i32) -> (i32, i32) {
    %c0_i32 = arith.constant 0 : i32
    %c0_i32_0 = arith.constant 0 : i32
    %c0_i32_1 = arith.constant 0 : i32
    return %c0_i32, %c0_i32_0 : i32, i32
  }
  func.func @transform_3(%arg0: i32) -> (i32, i32) {
    %c0_i32 = arith.constant 0 : i32
    %c0_i32_0 = arith.constant 0 : i32
    %c0_i32_1 = arith.constant 0 : i32
    return %c0_i32, %c0_i32_0 : i32, i32
  }
  func.func @transform_4(%arg0: i32) -> (i32, i32) {
    %c0_i32 = arith.constant 0 : i32
    %c0_i32_0 = arith.constant 0 : i32
    %c0_i32_1 = arith.constant 0 : i32
    return %c0_i32, %c0_i32_0 : i32, i32
  }
  func.func @transform_5(%arg0: i32) -> (i32, i32) {
    %c0_i32 = arith.constant 0 : i32
    %c0_i32_0 = arith.constant 0 : i32
    %c0_i32_1 = arith.constant 0 : i32
    return %c0_i32, %c0_i32_0 : i32, i32
  }
  func.func @transform_6(%arg0: i32) -> (i32, i32) {
    %c0_i32 = arith.constant 0 : i32
    %c0_i32_0 = arith.constant 0 : i32
    %c0_i32_1 = arith.constant 0 : i32
    return %c0_i32, %c0_i32_0 : i32, i32
  }
  func.func @transform_7(%arg0: i32) -> (i32, i32) {
    %c0_i32 = arith.constant 0 : i32
    %c0_i32_0 = arith.constant 0 : i32
    %c0_i32_1 = arith.constant 0 : i32
    return %c0_i32, %c0_i32_0 : i32, i32
  }
  func.func @transform_8(%arg0: i32) -> (i32, i32) {
    %c0_i32 = arith.constant 0 : i32
    %c0_i32_0 = arith.constant 0 : i32
    %c0_i32_1 = arith.constant 0 : i32
    return %c0_i32, %c0_i32_0 : i32, i32
  }
  func.func @transform_9(%arg0: i32) -> (i32, i32) {
    %c0_i32 = arith.constant 0 : i32
    %c0_i32_0 = arith.constant 0 : i32
    %c0_i32_1 = arith.constant 0 : i32
    return %c0_i32, %c0_i32_0 : i32, i32
  }
  func.func @transform_10(%arg0: i32) -> (i32, i32) {
    %c0_i32 = arith.constant 0 : i32
    %c0_i32_0 = arith.constant 0 : i32
    %c0_i32_1 = arith.constant 0 : i32
    return %c0_i32, %c0_i32_0 : i32, i32
  }
  func.func @transform_11(%arg0: i32) -> (i32, i32) {
    %c0_i32 = arith.constant 0 : i32
    %c0_i32_0 = arith.constant 0 : i32
    return %arg0, %c0_i32 : i32, i32
  }
}

</mosaic_0001>

<llo_original>
// kernel: tpu_custom_call.1
$region0: #{tpu_custom_call.1}
  #allocation0 [shape = 'u32[]', space=smem, size = 0x4, offset = 0x4, fixed_abs, tag = 'smem constant byte address 0x4 - core index']
  #allocation1 [shape = 'u32[144,128]{1,0:T(1,128)}', space=vmem, size = 0x12000, scoped, tag = 'internal scratch']
  #allocation2 [shape = 'f32[16,128]{1,0:T(8,128)}', space=vmem, size = 0x2000, scoped, tag = 'scratch operand']
  %s0 = inlined_call_operand.vmem [shape: f32[16,128], index: 0, kind: input, shape index: {}]
  %s1 = inlined_call_operand.vmem [shape: f32[8,1], index: 1, kind: input, shape index: {}]
  %s2 = inlined_call_operand.vmem [shape: f32[8,1], index: 2, kind: input, shape index: {}]
  %s3 = inlined_call_operand.vmem [shape: f32[8,8], index: 3, kind: input, shape index: {}]
  %s4 = inlined_call_operand.vmem [shape: f32[8,1], index: 4, kind: input, shape index: {}]
  %s5 = inlined_call_operand.vmem [shape: f32[1,128], index: 5, kind: input, shape index: {}]
  %s6 = inlined_call_operand.vmem [shape: f32[1,128], index: 6, kind: input, shape index: {}]
  %s7 = inlined_call_operand.hbm [shape: f32[128,128], index: 7, kind: input, shape index: {}]
  %s8 = inlined_call_operand.vmem [shape: f32[1,128], index: 8, kind: input, shape index: {}]
  %s9 = inlined_call_operand.hbm [shape: f32[128,128], index: 9, kind: input, shape index: {}]
  %s10 = inlined_call_operand.vmem [shape: f32[1,128], index: 10, kind: input, shape index: {}]
  %s11 = inlined_call_operand.hbm [shape: f32[16,128], index: 11, kind: output, shape index: {}]
  %s12 = sld [smem:[#allocation0]]
  $region62: #{tpu_custom_call.1} parent=0
    _
  %s14 = ssub.s32 1, %s12
  %s15 = scalar_select 0, %s14, %s12
  $region1: #{tpu_custom_call.1} parent=0
    #allocation3 [shape = 'u8[65536]{0}', space=vmem, size = 0x10000, scoped, tag = 'input window, operand 7, single buffered']
    #allocation4 [shape = 's32[1]{0}', space=sflag, size = 0x4, scoped, tag = 'scoped memory for tpu_custom_call.1']
    #allocation5 [shape = 's32[1]{0}', space=sflag, size = 0x4, scoped, tag = 'scoped memory for tpu_custom_call.1']
    #allocation6 [shape = 'u8[65536]{0}', space=vmem, size = 0x10000, scoped, tag = 'input window, operand 9, single buffered']
    #allocation7 [shape = 's32[1]{0}', space=sflag, size = 0x4, scoped, tag = 'scoped memory for tpu_custom_call.1']
    #allocation8 [shape = 'u8[8192]{0}', space=vmem, size = 0x2000, scoped, tag = 'output window, operand 0, single buffered']
    %16 = vsyncpa [#allocation4], 0
    %17 = vsyncpa [#allocation7], 0
    %18 = vsyncpa [#allocation5], 0
    // Predicated region
    $region2: #{tpu_custom_call.1} parent=1 // pred_check
      _
    $region3: #{tpu_custom_call.1} parent=1 // pred_check_branch
      %20 = sbr.rel (0) target = $region5
    $region4: #{tpu_custom_call.1} parent=1 // pred_region
      _
    $region5: #{tpu_custom_call.1} parent=1 // pred_fallthru
      _
    // Predicated region
    $region6: #{tpu_custom_call.1} parent=1 // pred_check
      _
    $region7: #{tpu_custom_call.1} parent=1 // pred_check_branch
      %22 = sbr.rel (0) target = $region9
    $region8: #{tpu_custom_call.1} parent=1 // pred_region
      _
    $region9: #{tpu_custom_call.1} parent=1 // pred_fallthru
      _
    // Predicated region
    $region10: #{tpu_custom_call.1} parent=1 // pred_check
      _
    $region11: #{tpu_custom_call.1} parent=1 // pred_check_branch
      %24 = sbr.rel (0) target = $region13
    $region12: #{tpu_custom_call.1} parent=1 // pred_region
      _
    $region13: #{tpu_custom_call.1} parent=1 // pred_fallthru
      _
    // Predicated region
    $region14: #{tpu_custom_call.1} parent=1 // pred_check
      _
    $region15: #{tpu_custom_call.1} parent=1 // pred_check_branch
      %26 = sbr.rel (0) target = $region17
    $region16: #{tpu_custom_call.1} parent=1 // pred_region
      _
    $region17: #{tpu_custom_call.1} parent=1 // pred_fallthru
      _
    // Predicated region
    $region18: #{tpu_custom_call.1} parent=1 // pred_check
      _
    $region19: #{tpu_custom_call.1} parent=1 // pred_check_branch
      %28 = sbr.rel (0) target = $region21
    $region20: #{tpu_custom_call.1} parent=1 // pred_region
      _
    $region21: #{tpu_custom_call.1} parent=1 // pred_fallthru
      _
    // Predicated region
    $region22: #{tpu_custom_call.1} parent=1 // pred_check
      _
    $region23: #{tpu_custom_call.1} parent=1 // pred_check_branch
      %30 = sbr.rel (0) target = $region25
    $region24: #{tpu_custom_call.1} parent=1 // pred_region
      _
    $region25: #{tpu_custom_call.1} parent=1 // pred_fallthru
      _
    // Predicated region
    $region26: #{tpu_custom_call.1} parent=1 // pred_check
      _
    $region27: #{tpu_custom_call.1} parent=1 // pred_check_branch
      %32 = sbr.rel (0) target = $region29
    $region28: #{tpu_custom_call.1} parent=1 // pred_region
      _
    $region29: #{tpu_custom_call.1} parent=1 // pred_fallthru
      _
    // Predicated region
    $region30: #{tpu_custom_call.1} parent=1 // pred_check
      _
    $region31: #{tpu_custom_call.1} parent=1 // pred_check_branch
      %34 = sbr.rel (0) target = $region33
    $region32: #{tpu_custom_call.1} parent=1 // pred_region
      %s36 = ssub.s32 2048, 2048
      %37 = vsyncadd [#allocation4], %s36
      %s38 = sshll.u32 [#allocation3], 4
      %s39 = int_to_ptr.vmem [resolvable:$true] %s38
      %44 = dma.hbm_to_vmem [thread:$0]  %s7, 2048, %s39, [#allocation4], 128, 128, 8
    $region33: #{tpu_custom_call.1} parent=1 // pred_fallthru
      _
    // Predicated region
    $region34: #{tpu_custom_call.1} parent=1 // pred_check
      _
    $region35: #{tpu_custom_call.1} parent=1 // pred_check_branch
      %46 = sbr.rel (0) target = $region37
    $region36: #{tpu_custom_call.1} parent=1 // pred_region
      _
    $region37: #{tpu_custom_call.1} parent=1 // pred_fallthru
      _
    // Predicated region
    $region38: #{tpu_custom_call.1} parent=1 // pred_check
      _
    $region39: #{tpu_custom_call.1} parent=1 // pred_check_branch
      %48 = sbr.rel (0) target = $region41
    $region40: #{tpu_custom_call.1} parent=1 // pred_region
      %s50 = ssub.s32 2048, 2048
      %51 = vsyncadd [#allocation7], %s50
      %s52 = sshll.u32 [#allocation6], 4
      %s53 = int_to_ptr.vmem [resolvable:$true] %s52
      %58 = dma.hbm_to_vmem [thread:$0]  %s9, 2048, %s53, [#allocation7], 128, 128, 8
    $region41: #{tpu_custom_call.1} parent=1 // pred_fallthru
      _
    // Predicated region
    $region42: #{tpu_custom_call.1} parent=1 // pred_check
      _
    $region43: #{tpu_custom_call.1} parent=1 // pred_check_branch
      %60 = sbr.rel (0) target = $region45
    $region44: #{tpu_custom_call.1} parent=1 // pred_region
      _
    $region45: #{tpu_custom_call.1} parent=1 // pred_fallthru
      _
    // Predicated region
    $region46: #{tpu_custom_call.1} parent=1 // pred_check
      _
    $region47: #{tpu_custom_call.1} parent=1 // pred_check_branch
      %62 = sbr.rel (0) target = $region49
    $region48: #{tpu_custom_call.1} parent=1 // pred_region
      %63 = dma.done [#allocation4], 2048
    $region49: #{tpu_custom_call.1} parent=1 // pred_fallthru
      _
    // Predicated region
    $region50: #{tpu_custom_call.1} parent=1 // pred_check
      _
    $region51: #{tpu_custom_call.1} parent=1 // pred_check_branch
      %65 = sbr.rel (0) target = $region53
    $region52: #{tpu_custom_call.1} parent=1 // pred_region
      %66 = dma.done [#allocation7], 2048
    $region53: #{tpu_custom_call.1} parent=1 // pred_fallthru
      _
    %v67 = vld [vmem:[%s1] sm:$0xff]
    %v68 = vld [vmem:[%s2] sm:$0xff]
    %v69 = vld [vmem:[%s3] sm:$0xff]
    %v70 = vld [vmem:[%s4] sm:$0xff]
    %v71 = vld [vmem:[%s0] sm:$0xff]
    %73 = vset.pattern.permute.xlu0 0
    %74 = vperm.xlu0 %73, %v67
    %v75 = vpop.permute.xlu0 %74
    %v77 = vmul.f32 %v71, %v75
    %79 = vset.pattern.permute.xlu0 0
    %80 = vperm.xlu0 %79, %v68
    %v81 = vpop.permute.xlu0 %80
    %v83 = vadd.f32 %v77, %v81
    %85 = vset.pattern.permute.xlu0 0
    %86 = vperm.xlu0 %85, %v70
    %v87 = vpop.permute.xlu0 %86
    %vm89 = vcmask 64512
    %v91 = vsel %vm89, %v69, 0
    %93 = vmatprep.subr.mxu0 0.0
    %94 = vmatpush1.msra.mxu0 %v83
    %95 = vmatprep.subr.mxu0 0.0
    %96 = vmatpush1.msra.mxu0 0.0
    %97 = vmatprep.subr.mxu0 0.0
    %98 = vmatpush1.msra.mxu0 0.0
    %99 = vmatprep.subr.mxu0 0.0
    %100 = vmatpush1.msra.mxu0 0.0
    %101 = vmatprep.subr.mxu0 0.0
    %102 = vmatpush1.msra.mxu0 0.0
    %103 = vmatprep.subr.mxu0 0.0
    %104 = vmatpush1.msra.mxu0 0.0
    %105 = vmatprep.subr.mxu0 0.0
    %106 = vmatpush1.msra.mxu0 0.0
    %107 = vmatprep.subr.mxu0 0.0
    %108 = vmatpush1.msra.mxu0 0.0
    %109 = vmatprep.subr.mxu0 0.0
    %110 = vmatpush1.msra.mxu0 0.0
    %111 = vmatprep.subr.mxu0 0.0
    %112 = vmatpush1.msra.mxu0 0.0
    %113 = vmatprep.subr.mxu0 0.0
    %114 = vmatpush1.msra.mxu0 0.0
    %115 = vmatprep.subr.mxu0 0.0
    %116 = vmatpush1.msra.mxu0 0.0
    %117 = vmatprep.subr.mxu0 0.0
    %118 = vmatpush1.msra.mxu0 0.0
    %119 = vmatprep.subr.mxu0 0.0
    %120 = vmatpush1.msra.mxu0 0.0
    %121 = vmatprep.subr.mxu0 0.0
    %122 = vmatpush1.msra.mxu0 0.0
    %123 = vmatprep.subr.mxu0 0.0
    %124 = vmatpush1.msra.mxu0 0.0
    %125 = vmatprep.subr.mxu0 0.0
    %126 = vmatpush1.msra.mxu0 0.0
    %127 = vmatprep.subr.mxu0 0.0
    %128 = vmatpush1.msra.mxu0 0.0
    %129 = vmatprep.subr.mxu0 0.0
    %130 = vmatpush1.msra.mxu0 0.0
    %131 = vmatprep.subr.mxu0 0.0
    %132 = vmatpush1.msra.mxu0 0.0
    %133 = vmatprep.subr.mxu0 0.0
    %134 = vmatpush1.msra.mxu0 0.0
    %135 = vmatprep.subr.mxu0 0.0
    %136 = vmatpush1.msra.mxu0 0.0
    %137 = vmatprep.subr.mxu0 0.0
    %138 = vmatpush1.msra.mxu0 0.0
    %139 = vmatprep.subr.mxu0 0.0
    %140 = vmatpush1.msra.mxu0 0.0
    %141 = vmatprep.subr.mxu0 0.0
    %142 = vmatpush1.msra.mxu0 0.0
    %143 = vmatprep.subr.mxu0 0.0
    %144 = vmatpush1.msra.mxu0 0.0
    %145 = vmatprep.subr.mxu0 0.0
    %146 = vmatpush1.msra.mxu0 0.0
    %147 = vmatprep.subr.mxu0 0.0
    %148 = vmatpush1.msra.mxu0 0.0
    %149 = vmatprep.subr.mxu0 0.0
    %150 = vmatpush1.msra.mxu0 0.0
    %151 = vmatprep.subr.mxu0 0.0
    %152 = vmatpush1.msra.mxu0 0.0
    %153 = vmatprep.subr.mxu0 0.0
    %154 = vmatpush1.msra.mxu0 0.0
    %155 = vmatprep.subr.mxu0 0.0
    %156 = vmatpush1.msra.mxu0 0.0
    %157 = vmatprep.mubr.f32.mxu0 0.0
    %158 = vmatmul.mubr.f32.gmra.mrb[0].mxu0 %v91
    %v159 = vpop.f32.mrb[0].mxu0
    %v160 = vadd.f32 %v87, %v159
    %v161 = vpop.f32.mrb[0].mxu0
    %162 = vdwg.mxu0
    %v163 = vmul.f32 %v160, 0.5
    %v164 = vrcp.pop 1.4142135
    %v165 = vmul.f32 %v160, %v164
    %v166 = verf.f32.pop %v165
    %v167 = vadd.f32 %v166, 1.0
    %v168 = vmul.f32 %v163, %v167
    %v169 = vadd.f32 %v71, %v168
    %170 = vst [vmem:[#allocation2] sm:$0xff] %v169
    %s171 = scalar_lea.vmem %s0, 8
    %v172 = vld [vmem:[%s171] sm:$0xff]
    %v173 = vmul.f32 %v172, %v75
    %v174 = vadd.f32 %v173, %v81
    %175 = vmatprep.subr.mxu0 0.0
    %176 = vmatpush1.msra.mxu0 %v174
    %177 = vmatprep.subr.mxu0 0.0
    %178 = vmatpush1.msra.mxu0 0.0
    %179 = vmatprep.subr.mxu0 0.0
    %180 = vmatpush1.msra.mxu0 0.0
    %181 = vmatprep.subr.mxu0 0.0
    %182 = vmatpush1.msra.mxu0 0.0
    %183 = vmatprep.subr.mxu0 0.0
    %184 = vmatpush1.msra.mxu0 0.0
    %185 = vmatprep.subr.mxu0 0.0
    %186 = vmatpush1.msra.mxu0 0.0
    %187 = vmatprep.subr.mxu0 0.0
    %188 = vmatpush1.msra.mxu0 0.0
    %189 = vmatprep.subr.mxu0 0.0
    %190 = vmatpush1.msra.mxu0 0.0
    %191 = vmatprep.subr.mxu0 0.0
    %192 = vmatpush1.msra.mxu0 0.0
    %193 = vmatprep.subr.mxu0 0.0
    %194 = vmatpush1.msra.mxu0 0.0
    %195 = vmatprep.subr.mxu0 0.0
    %196 = vmatpush1.msra.mxu0 0.0
    %197 = vmatprep.subr.mxu0 0.0
    %198 = vmatpush1.msra.mxu0 0.0
    %199 = vmatprep.subr.mxu0 0.0
    %200 = vmatpush1.msra.mxu0 0.0
    %201 = vmatprep.subr.mxu0 0.0
    %202 = vmatpush1.msra.mxu0 0.0
    %203 = vmatprep.subr.mxu0 0.0
    %204 = vmatpush1.msra.mxu0 0.0
    %205 = vmatprep.subr.mxu0 0.0
    %206 = vmatpush1.msra.mxu0 0.0
    %207 = vmatprep.subr.mxu0 0.0
    %208 = vmatpush1.msra.mxu0 0.0
    %209 = vmatprep.subr.mxu0 0.0
    %210 = vmatpush1.msra.mxu0 0.0
    %211 = vmatprep.subr.mxu0 0.0
    %212 = vmatpush1.msra.mxu0 0.0
    %213 = vmatprep.subr.mxu0 0.0
    %214 = vmatpush1.msra.mxu0 0.0
    %215 = vmatprep.subr.mxu0 0.0
    %216 = vmatpush1.msra.mxu0 0.0
    %217 = vmatprep.subr.mxu0 0.0
    %218 = vmatpush1.msra.mxu0 0.0
    %219 = vmatprep.subr.mxu0 0.0
    %220 = vmatpush1.msra.mxu0 0.0
    %221 = vmatprep.subr.mxu0 0.0
    %222 = vmatpush1.msra.mxu0 0.0
    %223 = vmatprep.subr.mxu0 0.0
    %224 = vmatpush1.msra.mxu0 0.0
    %225 = vmatprep.subr.mxu0 0.0
    %226 = vmatpush1.msra.mxu0 0.0
    %227 = vmatprep.subr.mxu0 0.0
    %228 = vmatpush1.msra.mxu0 0.0
    %229 = vmatprep.subr.mxu0 0.0
    %230 = vmatpush1.msra.mxu0 0.0
    %231 = vmatprep.subr.mxu0 0.0
    %232 = vmatpush1.msra.mxu0 0.0
    %233 = vmatprep.subr.mxu0 0.0
    %234 = vmatpush1.msra.mxu0 0.0
    %235 = vmatprep.subr.mxu0 0.0
    %236 = vmatpush1.msra.mxu0 0.0
    %237 = vmatprep.subr.mxu0 0.0
    %238 = vmatpush1.msra.mxu0 0.0
    %239 = vmatprep.mubr.f32.mxu0 0.0
    %240 = vmatmul.mubr.f32.gmra.mrb[0].mxu0 %v91
    %v241 = vpop.f32.mrb[0].mxu0
    %v242 = vadd.f32 %v87, %v241
    %v243 = vpop.f32.mrb[0].mxu0
    %244 = vdwg.mxu0
    %v245 = vmul.f32 %v242, 0.5
    %v246 = vmul.f32 %v242, %v164
    %v247 = verf.f32.pop %v246
    %v248 = vadd.f32 %v247, 1.0
    %v249 = vmul.f32 %v245, %v248
    %v250 = vadd.f32 %v172, %v249
    %s251 = scalar_lea.vmem [#allocation2], 8
    %252 = vst [vmem:[%s251] sm:$0xff] %v250
    %v253 = vld [vmem:[#allocation2] sm:$0xff]
    %v254 = vld [vmem:[#allocation2 + $0x8] sm:$0xff]
    %v255 = vld [vmem:[%s5] sm:$0x1]
    %v257 = vlaneseq
    %v258 = vshrl.u32 %v257, 7
    %v259 = vsub.s32 0, %v258
    %v260 = vrot.slane %v255, %v259
    %v262 = vmul.f32 %v253, %v260
    %v263 = vmul.f32 %v254, %v260
    %v264 = vld [vmem:[%s6] sm:$0x1]
    %v266 = vlaneseq
    %v267 = vshrl.u32 %v266, 7
    %v268 = vsub.s32 0, %v267
    %v269 = vrot.slane %v264, %v268
    %v271 = vadd.f32 %v262, %v269
    %v272 = vadd.f32 %v263, %v269
    %v273 = vld [vmem:[#allocation3] sm:$0xff]
    %v274 = vld [vmem:[#allocation3 + $0x8] sm:$0xff]
    %v275 = vld [vmem:[#allocation3 + $0x10] sm:$0xff]
    %v276 = vld [vmem:[#allocation3 + $0x18] sm:$0xff]
    %v277 = vld [vmem:[#allocation3 + $0x20] sm:$0xff]
    %v278 = vld [vmem:[#allocation3 + $0x28] sm:$0xff]
    %v279 = vld [vmem:[#allocation3 + $0x30] sm:$0xff]
    %v280 = vld [vmem:[#allocation3 + $0x38] sm:$0xff]
    %v281 = vld [vmem:[#allocation3 + $0x40] sm:$0xff]
    %v282 = vld [vmem:[#allocation3 + $0x48] sm:$0xff]
    %v283 = vld [vmem:[#allocation3 + $0x50] sm:$0xff]
    %v284 = vld [vmem:[#allocation3 + $0x58] sm:$0xff]
    %v285 = vld [vmem:[#allocation3 + $0x60] sm:$0xff]
    %v286 = vld [vmem:[#allocation3 + $0x68] sm:$0xff]
    %v287 = vld [vmem:[#allocation3 + $0x70] sm:$0xff]
    %v288 = vld [vmem:[#allocation3 + $0x78] sm:$0xff]
    %v289 = vld [vmem:[%s8] sm:$0x1]
    %v291 = vlaneseq
    %v292 = vshrl.u32 %v291, 7
    %v293 = vsub.s32 0, %v292
    %v294 = vrot.slane %v289, %v293
    %296 = vmatprep.subr.mxu0 0.0
    %297 = vmatpush1.msra.mxu0 %v273
    %298 = vmatprep.subr.mxu0 0.0
    %299 = vmatpush1.msra.mxu0 %v274
    %300 = vmatprep.subr.mxu0 0.0
    %301 = vmatpush1.msra.mxu0 %v275
    %302 = vmatprep.subr.mxu0 0.0
    %303 = vmatpush1.msra.mxu0 %v276
    %304 = vmatprep.subr.mxu0 0.0
    %305 = vmatpush1.msra.mxu0 %v277
    %306 = vmatprep.subr.mxu0 0.0
    %307 = vmatpush1.msra.mxu0 %v278
    %308 = vmatprep.subr.mxu0 0.0
    %309 = vmatpush1.msra.mxu0 %v279
    %310 = vmatprep.subr.mxu0 0.0
    %311 = vmatpush1.msra.mxu0 %v280
    %312 = vmatprep.subr.mxu0 0.0
    %313 = vmatpush1.msra.mxu0 %v281
    %314 = vmatprep.subr.mxu0 0.0
    %315 = vmatpush1.msra.mxu0 %v282
    %316 = vmatprep.subr.mxu0 0.0
    %317 = vmatpush1.msra.mxu0 %v283
    %318 = vmatprep.subr.mxu0 0.0
    %319 = vmatpush1.msra.mxu0 %v284
    %320 = vmatprep.subr.mxu0 0.0
    %321 = vmatpush1.msra.mxu0 %v285
    %322 = vmatprep.subr.mxu0 0.0
    %323 = vmatpush1.msra.mxu0 %v286
    %324 = vmatprep.subr.mxu0 0.0
    %325 = vmatpush1.msra.mxu0 %v287
    %326 = vmatprep.subr.mxu0 0.0
    %327 = vmatpush1.msra.mxu0 %v288
    %328 = vmatprep.subr.mxu0 0.0
    %329 = vmatpush1.msra.mxu0 0.0
    %330 = vmatprep.subr.mxu0 0.0
    %331 = vmatpush1.msra.mxu0 0.0
    %332 = vmatprep.subr.mxu0 0.0
    %333 = vmatpush1.msra.mxu0 0.0
    %334 = vmatprep.subr.mxu0 0.0
    %335 = vmatpush1.msra.mxu0 0.0
    %336 = vmatprep.subr.mxu0 0.0
    %337 = vmatpush1.msra.mxu0 0.0
    %338 = vmatprep.subr.mxu0 0.0
    %339 = vmatpush1.msra.mxu0 0.0
    %340 = vmatprep.subr.mxu0 0.0
    %341 = vmatpush1.msra.mxu0 0.0
    %342 = vmatprep.subr.mxu0 0.0
    %343 = vmatpush1.msra.mxu0 0.0
    %344 = vmatprep.subr.mxu0 0.0
    %345 = vmatpush1.msra.mxu0 0.0
    %346 = vmatprep.subr.mxu0 0.0
    %347 = vmatpush1.msra.mxu0 0.0
    %348 = vmatprep.subr.mxu0 0.0
    %349 = vmatpush1.msra.mxu0 0.0
    %350 = vmatprep.subr.mxu0 0.0
    %351 = vmatpush1.msra.mxu0 0.0
    %352 = vmatprep.subr.mxu0 0.0
    %353 = vmatpush1.msra.mxu0 0.0
    %354 = vmatprep.subr.mxu0 0.0
    %355 = vmatpush1.msra.mxu0 0.0
    %356 = vmatprep.subr.mxu0 0.0
    %357 = vmatpush1.msra.mxu0 0.0
    %358 = vmatprep.subr.mxu0 0.0
    %359 = vmatpush1.msra.mxu0 0.0
    %360 = vmatprep.mubr.f32.mxu0 0.0
    %361 = vmatmul.mubr.f32.gmra.mrb[0].mxu0 %v271
    %v362 = vpop.f32.mrb[0].mxu0
    %v363 = vadd.f32 %v294, %v362
    %v364 = vpop.f32.mrb[0].mxu0
    %365 = vmatprep.mubr.f32.mxu0 0.0
    %366 = vmatmul.mubr.f32.gmra.mrb[0].mxu0 %v272
    %v367 = vpop.f32.mrb[0].mxu0
    %v368 = vadd.f32 %v294, %v367
    %v369 = vpop.f32.mrb[0].mxu0
    %370 = vdwg.mxu0
    %v371 = vmul.f32 %v363, 0.5
    %v372 = vmul.f32 %v368, 0.5
    %v373 = vmul.f32 %v363, %v164
    %v374 = vmul.f32 %v368, %v164
    %v375 = verf.f32.pop %v373
    %v376 = verf.f32.pop %v374
    %v377 = vadd.f32 %v375, 1.0
    %v378 = vadd.f32 %v376, 1.0
    %v379 = vmul.f32 %v371, %v377
    %v380 = vmul.f32 %v372, %v378
    %v381 = vld [vmem:[#allocation6] sm:$0xff]
    %v382 = vld [vmem:[#allocation6 + $0x8] sm:$0xff]
    %v383 = vld [vmem:[#allocation6 + $0x10] sm:$0xff]
    %v384 = vld [vmem:[#allocation6 + $0x18] sm:$0xff]
    %v385 = vld [vmem:[#allocation6 + $0x20] sm:$0xff]
    %v386 = vld [vmem:[#allocation6 + $0x28] sm:$0xff]
    %v387 = vld [vmem:[#allocation6 + $0x30] sm:$0xff]
    %v388 = vld [vmem:[#allocation6 + $0x38] sm:$0xff]
    %v389 = vld [vmem:[#allocation6 + $0x40] sm:$0xff]
    %v390 = vld [vmem:[#allocation6 + $0x48] sm:$0xff]
    %v391 = vld [vmem:[#allocation6 + $0x50] sm:$0xff]
    %v392 = vld [vmem:[#allocation6 + $0x58] sm:$0xff]
    %v393 = vld [vmem:[#allocation6 + $0x60] sm:$0xff]
    %v394 = vld [vmem:[#allocation6 + $0x68] sm:$0xff]
    %v395 = vld [vmem:[#allocation6 + $0x70] sm:$0xff]
    %v396 = vld [vmem:[#allocation6 + $0x78] sm:$0xff]
    %v397 = vld [vmem:[%s10] sm:$0x1]
    %v399 = vlaneseq
    %v400 = vshrl.u32 %v399, 7
    %v401 = vsub.s32 0, %v400
    %v402 = vrot.slane %v397, %v401
    %404 = vmatprep.subr.mxu0 0.0
    %405 = vmatpush1.msra.mxu0 %v381
    %406 = vmatprep.subr.mxu0 0.0
    %407 = vmatpush1.msra.mxu0 %v382
    %408 = vmatprep.subr.mxu0 0.0
    %409 = vmatpush1.msra.mxu0 %v383
    %410 = vmatprep.subr.mxu0 0.0
    %411 = vmatpush1.msra.mxu0 %v384
    %412 = vmatprep.subr.mxu0 0.0
    %413 = vmatpush1.msra.mxu0 %v385
    %414 = vmatprep.subr.mxu0 0.0
    %415 = vmatpush1.msra.mxu0 %v386
    %416 = vmatprep.subr.mxu0 0.0
    %417 = vmatpush1.msra.mxu0 %v387
    %418 = vmatprep.subr.mxu0 0.0
    %419 = vmatpush1.msra.mxu0 %v388
    %420 = vmatprep.subr.mxu0 0.0
    %421 = vmatpush1.msra.mxu0 %v389
    %422 = vmatprep.subr.mxu0 0.0
    %423 = vmatpush1.msra.mxu0 %v390
    %424 = vmatprep.subr.mxu0 0.0
    %425 = vmatpush1.msra.mxu0 %v391
    %426 = vmatprep.subr.mxu0 0.0
    %427 = vmatpush1.msra.mxu0 %v392
    %428 = vmatprep.subr.mxu0 0.0
    %429 = vmatpush1.msra.mxu0 %v393
    %430 = vmatprep.subr.mxu0 0.0
    %431 = vmatpush1.msra.mxu0 %v394
    %432 = vmatprep.subr.mxu0 0.0
    %433 = vmatpush1.msra.mxu0 %v395
    %434 = vmatprep.subr.mxu0 0.0
    %435 = vmatpush1.msra.mxu0 %v396
    %436 = vmatprep.subr.mxu0 0.0
    %437 = vmatpush1.msra.mxu0 0.0
    %438 = vmatprep.subr.mxu0 0.0
    %439 = vmatpush1.msra.mxu0 0.0
    %440 = vmatprep.subr.mxu0 0.0
    %441 = vmatpush1.msra.mxu0 0.0
    %442 = vmatprep.subr.mxu0 0.0
    %443 = vmatpush1.msra.mxu0 0.0
    %444 = vmatprep.subr.mxu0 0.0
    %445 = vmatpush1.msra.mxu0 0.0
    %446 = vmatprep.subr.mxu0 0.0
    %447 = vmatpush1.msra.mxu0 0.0
    %448 = vmatprep.subr.mxu0 0.0
    %449 = vmatpush1.msra.mxu0 0.0
    %450 = vmatprep.subr.mxu0 0.0
    %451 = vmatpush1.msra.mxu0 0.0
    %452 = vmatprep.subr.mxu0 0.0
    %453 = vmatpush1.msra.mxu0 0.0
    %454 = vmatprep.subr.mxu0 0.0
    %455 = vmatpush1.msra.mxu0 0.0
    %456 = vmatprep.subr.mxu0 0.0
    %457 = vmatpush1.msra.mxu0 0.0
    %458 = vmatprep.subr.mxu0 0.0
    %459 = vmatpush1.msra.mxu0 0.0
    %460 = vmatprep.subr.mxu0 0.0
    %461 = vmatpush1.msra.mxu0 0.0
    %462 = vmatprep.subr.mxu0 0.0
    %463 = vmatpush1.msra.mxu0 0.0
    %464 = vmatprep.subr.mxu0 0.0
    %465 = vmatpush1.msra.mxu0 0.0
    %466 = vmatprep.subr.mxu0 0.0
    %467 = vmatpush1.msra.mxu0 0.0
    %468 = vmatprep.mubr.f32.mxu0 0.0
    %469 = vmatmul.mubr.f32.gmra.mrb[0].mxu0 %v379
    %v470 = vpop.f32.mrb[0].mxu0
    %v471 = vadd.f32 %v402, %v470
    %v472 = vpop.f32.mrb[0].mxu0
    %473 = vmatprep.mubr.f32.mxu0 0.0
    %474 = vmatmul.mubr.f32.gmra.mrb[0].mxu0 %v380
    %v475 = vpop.f32.mrb[0].mxu0
    %v476 = vadd.f32 %v402, %v475
    %v477 = vpop.f32.mrb[0].mxu0
    %478 = vdwg.mxu0
    %v479 = vadd.f32 %v253, %v471
    %v480 = vadd.f32 %v254, %v476
    %481 = vst [vmem:[#allocation8] sm:$0xff] %v479
    %482 = vst [vmem:[#allocation8 + $0x8] sm:$0xff] %v480
    // Predicated region
    $region54: #{tpu_custom_call.1} parent=1 // pred_check
      _
    $region55: #{tpu_custom_call.1} parent=1 // pred_check_branch
      %484 = sbr.rel (0) target = $region57
    $region56: #{tpu_custom_call.1} parent=1 // pred_region
      %s486 = ssub.s32 256, 256
      %487 = vsyncadd [#allocation5], %s486
      %s488 = sshll.u32 [#allocation8], 4
      %s489 = int_to_ptr.vmem [resolvable:$true] %s488
      %494 = dma.vmem_to_hbm [thread:$0]  %s489, 256, %s11, [#allocation5], 128, 128, 8
    $region57: #{tpu_custom_call.1} parent=1 // pred_fallthru
      _
    // Predicated region
    $region58: #{tpu_custom_call.1} parent=1 // pred_check
      _
    $region59: #{tpu_custom_call.1} parent=1 // pred_check_branch
      %496 = sbr.rel (0) target = $region61
    $region60: #{tpu_custom_call.1} parent=1 // pred_region
      %497 = dma.done [#allocation5], 256
    $region61: #{tpu_custom_call.1} parent=1 // pred_fallthru
      _
    %498 = vsyncpa [#allocation4], 1
    %499 = vsyncpa [#allocation7], 1
    %500 = vsyncpa [#allocation5], 1

// kernel: tpu_custom_call.1
$region0: #{tpu_custom_call.1}
  #allocation0 [shape = 'u32[]', space=smem, size = 0x4, offset = 0x4, fixed_abs, tag = 'smem constant byte address 0x4 - core index']
  #allocation1 [shape = 'u32[144,128]{1,0:T(1,128)}', space=vmem, size = 0x12000, scoped, tag = 'internal scratch']
  #allocation2 [shape = 'f32[16,128]{1,0:T(8,128)}', space=vmem, size = 0x2000, scoped, tag = 'scratch operand']
  %s0 = inlined_call_operand.vmem [shape: f32[16,128], index: 0, kind: input, shape index: {}]
  %s1 = inlined_call_operand.vmem [shape: f32[8,1], index: 1, kind: input, shape index: {}]
  %s2 = inlined_call_operand.vmem [shape: f32[8,1], index: 2, kind: input, shape index: {}]
  %s3 = inlined_call_operand.vmem [shape: f32[8,8], index: 3, kind: input, shape index: {}]
  %s4 = inlined_call_operand.vmem [shape: f32[8,1], index: 4, kind: input, shape index: {}]
  %s5 = inlined_call_operand.vmem [shape: f32[1,128], index: 5, kind: input, shape index: {}]
  %s6 = inlined_call_operand.vmem [shape: f32[1,128], index: 6, kind: input, shape index: {}]
  %s7 = inlined_call_operand.hbm [shape: f32[128,128], index: 7, kind: input, shape index: {}]
  %s8 = inlined_call_operand.vmem [shape: f32[1,128], index: 8, kind: input, shape index: {}]
  %s9 = inlined_call_operand.hbm [shape: f32[128,128], index: 9, kind: input, shape index: {}]
  %s10 = inlined_call_operand.vmem [shape: f32[1,128], index: 10, kind: input, shape index: {}]
  %s11 = inlined_call_operand.hbm [shape: f32[16,128], index: 11, kind: output, shape index: {}]
  %s12 = sld [smem:[#allocation0]]
  $region62: #{tpu_custom_call.1} parent=0
    _
  %s14 = ssub.s32 1, %s12
  %s15 = scalar_select 0, %s14, %s12
  $region1: #{tpu_custom_call.1} parent=0
    #allocation3 [shape = 'u8[65536]{0}', space=vmem, size = 0x10000, scoped, tag = 'input window, operand 7, single buffered']
    #allocation4 [shape = 's32[1]{0}', space=sflag, size = 0x4, scoped, tag = 'scoped memory for tpu_custom_call.1']
    #allocation5 [shape = 's32[1]{0}', space=sflag, size = 0x4, scoped, tag = 'scoped memory for tpu_custom_call.1']
    #allocation6 [shape = 'u8[65536]{0}', space=vmem, size = 0x10000, scoped, tag = 'input window, operand 9, single buffered']
    #allocation7 [shape = 's32[1]{0}', space=sflag, size = 0x4, scoped, tag = 'scoped memory for tpu_custom_call.1']
    #allocation8 [shape = 'u8[8192]{0}', space=vmem, size = 0x2000, scoped, tag = 'output window, operand 0, single buffered']
    %16 = vsyncpa [#allocation4], 0
    %17 = vsyncpa [#allocation7], 0
    %18 = vsyncpa [#allocation5], 0
    // Predicated region
    $region2: #{tpu_custom_call.1} parent=1 // pred_check
      _
    $region3: #{tpu_custom_call.1} parent=1 // pred_check_branch
      %20 = sbr.rel (0) target = $region5
    $region4: #{tpu_custom_call.1} parent=1 // pred_region
      _
    $region5: #{tpu_custom_call.1} parent=1 // pred_fallthru
      _
    // Predicated region
    $region6: #{tpu_custom_call.1} parent=1 // pred_check
      _
    $region7: #{tpu_custom_call.1} parent=1 // pred_check_branch
      %22 = sbr.rel (0) target = $region9
    $region8: #{tpu_custom_call.1} parent=1 // pred_region
      _
    $region9: #{tpu_custom_call.1} parent=1 // pred_fallthru
      _
    // Predicated region
    $region10: #{tpu_custom_call.1} parent=1 // pred_check
      _
    $region11: #{tpu_custom_call.1} parent=1 // pred_check_branch
      %24 = sbr.rel (0) target = $region13
    $region12: #{tpu_custom_call.1} parent=1 // pred_region
      _
    $region13: #{tpu_custom_call.1} parent=1 // pred_fallthru
      _
    // Predicated region
    $region14: #{tpu_custom_call.1} parent=1 // pred_check
      _
    $region15: #{tpu_custom_call.1} parent=1 // pred_check_branch
      %26 = sbr.rel (0) target = $region17
    $region16: #{tpu_custom_call.1} parent=1 // pred_region
      _
    $region17: #{tpu_custom_call.1} parent=1 // pred_fallthru
      _
    // Predicated region
    $region18: #{tpu_custom_call.1} parent=1 // pred_check
      _
    $region19: #{tpu_custom_call.1} parent=1 // pred_check_branch
      %28 = sbr.rel (0) target = $region21
    $region20: #{tpu_custom_call.1} parent=1 // pred_region
      _
    $region21: #{tpu_custom_call.1} parent=1 // pred_fallthru
      _
    // Predicated region
    $region22: #{tpu_custom_call.1} parent=1 // pred_check
      _
    $region23: #{tpu_custom_call.1} parent=1 // pred_check_branch
      %30 = sbr.rel (0) target = $region25
    $region24: #{tpu_custom_call.1} parent=1 // pred_region
      _
    $region25: #{tpu_custom_call.1} parent=1 // pred_fallthru
      _
    // Predicated region
    $region26: #{tpu_custom_call.1} parent=1 // pred_check
      _
    $region27: #{tpu_custom_call.1} parent=1 // pred_check_branch
      %32 = sbr.rel (0) target = $region29
    $region28: #{tpu_custom_call.1} parent=1 // pred_region
      _
    $region29: #{tpu_custom_call.1} parent=1 // pred_fallthru
      _
    // Predicated region
    $region30: #{tpu_custom_call.1} parent=1 // pred_check
      _
    $region31: #{tpu_custom_call.1} parent=1 // pred_check_branch
      %34 = sbr.rel (0) target = $region33
    $region32: #{tpu_custom_call.1} parent=1 // pred_region
      %s36 = ssub.s32 2048, 2048
      %37 = vsyncadd [#allocation4], %s36
      %s38 = sshll.u32 [#allocation3], 4
      %s39 = int_to_ptr.vmem [resolvable:$true] %s38
      %44 = dma.hbm_to_vmem [thread:$0]  %s7, 2048, %s39, [#allocation4], 128, 128, 8
    $region33: #{tpu_custom_call.1} parent=1 // pred_fallthru
      _
    // Predicated region
    $region34: #{tpu_custom_call.1} parent=1 // pred_check
      _
    $region35: #{tpu_custom_call.1} parent=1 // pred_check_branch
      %46 = sbr.rel (0) target = $region37
    $region36: #{tpu_custom_call.1} parent=1 // pred_region
      _
    $region37: #{tpu_custom_call.1} parent=1 // pred_fallthru
      _
    // Predicated region
    $region38: #{tpu_custom_call.1} parent=1 // pred_check
      _
    $region39: #{tpu_custom_call.1} parent=1 // pred_check_branch
      %48 = sbr.rel (0) target = $region41
    $region40: #{tpu_custom_call.1} parent=1 // pred_region
      %s50 = ssub.s32 2048, 2048
      %51 = vsyncadd [#allocation7], %s50
      %s52 = sshll.u32 [#allocation6], 4
      %s53 = int_to_ptr.vmem [resolvable:$true] %s52
      %58 = dma.hbm_to_vmem [thread:$0]  %s9, 2048, %s53, [#allocation7], 128, 128, 8
    $region41: #{tpu_custom_call.1} parent=1 // pred_fallthru
      _
    // Predicated region
    $region42: #{tpu_custom_call.1} parent=1 // pred_check
      _
    $region43: #{tpu_custom_call.1} parent=1 // pred_check_branch
      %60 = sbr.rel (0) target = $region45
    $region44: #{tpu_custom_call.1} parent=1 // pred_region
      _
    $region45: #{tpu_custom_call.1} parent=1 // pred_fallthru
      _
    // Predicated region
    $region46: #{tpu_custom_call.1} parent=1 // pred_check
      _
    $region47: #{tpu_custom_call.1} parent=1 // pred_check_branch
      %62 = sbr.rel (0) target = $region49
    $region48: #{tpu_custom_call.1} parent=1 // pred_region
      %63 = dma.done [#allocation4], 2048
    $region49: #{tpu_custom_call.1} parent=1 // pred_fallthru
      _
    // Predicated region
    $region50: #{tpu_custom_call.1} parent=1 // pred_check
      _
    $region51: #{tpu_custom_call.1} parent=1 // pred_check_branch
      %65 = sbr.rel (0) target = $region53
    $region52: #{tpu_custom_call.1} parent=1 // pred_region
      %66 = dma.done [#allocation7], 2048
    $region53: #{tpu_custom_call.1} parent=1 // pred_fallthru
      _
    %v67 = vld [vmem:[%s1] sm:$0xff]
    %v68 = vld [vmem:[%s2] sm:$0xff]
    %v69 = vld [vmem:[%s3] sm:$0xff]
    %v70 = vld [vmem:[%s4] sm:$0xff]
    %v71 = vld [vmem:[%s0] sm:$0xff]
    %73 = vset.pattern.permute.xlu0 0
    %74 = vperm.xlu0 %73, %v67
    %v75 = vpop.permute.xlu0 %74
    %v77 = vmul.f32 %v71, %v75
    %79 = vset.pattern.permute.xlu0 0
    %80 = vperm.xlu0 %79, %v68
    %v81 = vpop.permute.xlu0 %80
    %v83 = vadd.f32 %v77, %v81
    %85 = vset.pattern.permute.xlu0 0
    %86 = vperm.xlu0 %85, %v70
    %v87 = vpop.permute.xlu0 %86
    %vm89 = vcmask 64512
    %v91 = vsel %vm89, %v69, 0
    %93 = vmatprep.subr.mxu0 0.0
    %94 = vmatpush1.msra.mxu0 %v83
    %95 = vmatprep.subr.mxu0 0.0
    %96 = vmatpush1.msra.mxu0 0.0
    %97 = vmatprep.subr.mxu0 0.0
    %98 = vmatpush1.msra.mxu0 0.0
    %99 = vmatprep.subr.mxu0 0.0
    %100 = vmatpush1.msra.mxu0 0.0
    %101 = vmatprep.subr.mxu0 0.0
    %102 = vmatpush1.msra.mxu0 0.0
    %103 = vmatprep.subr.mxu0 0.0
    %104 = vmatpush1.msra.mxu0 0.0
    %105 = vmatprep.subr.mxu0 0.0
    %106 = vmatpush1.msra.mxu0 0.0
    %107 = vmatprep.subr.mxu0 0.0
    %108 = vmatpush1.msra.mxu0 0.0
    %109 = vmatprep.subr.mxu0 0.0
    %110 = vmatpush1.msra.mxu0 0.0
    %111 = vmatprep.subr.mxu0 0.0
    %112 = vmatpush1.msra.mxu0 0.0
    %113 = vmatprep.subr.mxu0 0.0
    %114 = vmatpush1.msra.mxu0 0.0
    %115 = vmatprep.subr.mxu0 0.0
    %116 = vmatpush1.msra.mxu0 0.0
    %117 = vmatprep.subr.mxu0 0.0
    %118 = vmatpush1.msra.mxu0 0.0
    %119 = vmatprep.subr.mxu0 0.0
    %120 = vmatpush1.msra.mxu0 0.0
    %121 = vmatprep.subr.mxu0 0.0
    %122 = vmatpush1.msra.mxu0 0.0
    %123 = vmatprep.subr.mxu0 0.0
    %124 = vmatpush1.msra.mxu0 0.0
    %125 = vmatprep.subr.mxu0 0.0
    %126 = vmatpush1.msra.mxu0 0.0
    %127 = vmatprep.subr.mxu0 0.0
    %128 = vmatpush1.msra.mxu0 0.0
    %129 = vmatprep.subr.mxu0 0.0
    %130 = vmatpush1.msra.mxu0 0.0
    %131 = vmatprep.subr.mxu0 0.0
    %132 = vmatpush1.msra.mxu0 0.0
    %133 = vmatprep.subr.mxu0 0.0
    %134 = vmatpush1.msra.mxu0 0.0
    %135 = vmatprep.subr.mxu0 0.0
    %136 = vmatpush1.msra.mxu0 0.0
    %137 = vmatprep.subr.mxu0 0.0
    %138 = vmatpush1.msra.mxu0 0.0
    %139 = vmatprep.subr.mxu0 0.0
    %140 = vmatpush1.msra.mxu0 0.0
    %141 = vmatprep.subr.mxu0 0.0
    %142 = vmatpush1.msra.mxu0 0.0
    %143 = vmatprep.subr.mxu0 0.0
    %144 = vmatpush1.msra.mxu0 0.0
    %145 = vmatprep.subr.mxu0 0.0
    %146 = vmatpush1.msra.mxu0 0.0
    %147 = vmatprep.subr.mxu0 0.0
    %148 = vmatpush1.msra.mxu0 0.0
    %149 = vmatprep.subr.mxu0 0.0
    %150 = vmatpush1.msra.mxu0 0.0
    %151 = vmatprep.subr.mxu0 0.0
    %152 = vmatpush1.msra.mxu0 0.0
    %153 = vmatprep.subr.mxu0 0.0
    %154 = vmatpush1.msra.mxu0 0.0
    %155 = vmatprep.subr.mxu0 0.0
    %156 = vmatpush1.msra.mxu0 0.0
    %157 = vmatprep.mubr.f32.mxu0 0.0
    %158 = vmatmul.mubr.f32.gmra.mrb[0].mxu0 %v91
    %v159 = vpop.f32.mrb[0].mxu0
    %v160 = vadd.f32 %v87, %v159
    %v161 = vpop.f32.mrb[0].mxu0
    %162 = vdwg.mxu0
    %v163 = vmul.f32 %v160, 0.5
    %v164 = vrcp.pop 1.4142135
    %v165 = vmul.f32 %v160, %v164
    %v166 = verf.f32.pop %v165
    %v167 = vadd.f32 %v166, 1.0
    %v168 = vmul.f32 %v163, %v167
    %v169 = vadd.f32 %v71, %v168
    %170 = vst [vmem:[#allocation2] sm:$0xff] %v169
    %s171 = scalar_lea.vmem %s0, 8
    %v172 = vld [vmem:[%s171] sm:$0xff]
    %v173 = vmul.f32 %v172, %v75
    %v174 = vadd.f32 %v173, %v81
    %175 = vmatprep.subr.mxu0 0.0
    %176 = vmatpush1.msra.mxu0 %v174
    %177 = vmatprep.subr.mxu0 0.0
    %178 = vmatpush1.msra.mxu0 0.0
    %179 = vmatprep.subr.mxu0 0.0
    %180 = vmatpush1.msra.mxu0 0.0
    %181 = vmatprep.subr.mxu0 0.0
    %182 = vmatpush1.msra.mxu0 0.0
    %183 = vmatprep.subr.mxu0 0.0
    %184 = vmatpush1.msra.mxu0 0.0
    %185 = vmatprep.subr.mxu0 0.0
    %186 = vmatpush1.msra.mxu0 0.0
    %187 = vmatprep.subr.mxu0 0.0
    %188 = vmatpush1.msra.mxu0 0.0
    %189 = vmatprep.subr.mxu0 0.0
    %190 = vmatpush1.msra.mxu0 0.0
    %191 = vmatprep.subr.mxu0 0.0
    %192 = vmatpush1.msra.mxu0 0.0
    %193 = vmatprep.subr.mxu0 0.0
    %194 = vmatpush1.msra.mxu0 0.0
    %195 = vmatprep.subr.mxu0 0.0
    %196 = vmatpush1.msra.mxu0 0.0
    %197 = vmatprep.subr.mxu0 0.0
    %198 = vmatpush1.msra.mxu0 0.0
    %199 = vmatprep.subr.mxu0 0.0
    %200 = vmatpush1.msra.mxu0 0.0
    %201 = vmatprep.subr.mxu0 0.0
    %202 = vmatpush1.msra.mxu0 0.0
    %203 = vmatprep.subr.mxu0 0.0
    %204 = vmatpush1.msra.mxu0 0.0
    %205 = vmatprep.subr.mxu0 0.0
    %206 = vmatpush1.msra.mxu0 0.0
    %207 = vmatprep.subr.mxu0 0.0
    %208 = vmatpush1.msra.mxu0 0.0
    %209 = vmatprep.subr.mxu0 0.0
    %210 = vmatpush1.msra.mxu0 0.0
    %211 = vmatprep.subr.mxu0 0.0
    %212 = vmatpush1.msra.mxu0 0.0
    %213 = vmatprep.subr.mxu0 0.0
    %214 = vmatpush1.msra.mxu0 0.0
    %215 = vmatprep.subr.mxu0 0.0
    %216 = vmatpush1.msra.mxu0 0.0
    %217 = vmatprep.subr.mxu0 0.0
    %218 = vmatpush1.msra.mxu0 0.0
    %219 = vmatprep.subr.mxu0 0.0
    %220 = vmatpush1.msra.mxu0 0.0
    %221 = vmatprep.subr.mxu0 0.0
    %222 = vmatpush1.msra.mxu0 0.0
    %223 = vmatprep.subr.mxu0 0.0
    %224 = vmatpush1.msra.mxu0 0.0
    %225 = vmatprep.subr.mxu0 0.0
    %226 = vmatpush1.msra.mxu0 0.0
    %227 = vmatprep.subr.mxu0 0.0
    %228 = vmatpush1.msra.mxu0 0.0
    %229 = vmatprep.subr.mxu0 0.0
    %230 = vmatpush1.msra.mxu0 0.0
    %231 = vmatprep.subr.mxu0 0.0
    %232 = vmatpush1.msra.mxu0 0.0
    %233 = vmatprep.subr.mxu0 0.0
    %234 = vmatpush1.msra.mxu0 0.0
    %235 = vmatprep.subr.mxu0 0.0
    %236 = vmatpush1.msra.mxu0 0.0
    %237 = vmatprep.subr.mxu0 0.0
    %238 = vmatpush1.msra.mxu0 0.0
    %239 = vmatprep.mubr.f32.mxu0 0.0
    %240 = vmatmul.mubr.f32.gmra.mrb[0].mxu0 %v91
    %v241 = vpop.f32.mrb[0].mxu0
    %v242 = vadd.f32 %v87, %v241
    %v243 = vpop.f32.mrb[0].mxu0
    %244 = vdwg.mxu0
    %v245 = vmul.f32 %v242, 0.5
    %v246 = vmul.f32 %v242, %v164
    %v247 = verf.f32.pop %v246
    %v248 = vadd.f32 %v247, 1.0
    %v249 = vmul.f32 %v245, %v248
    %v250 = vadd.f32 %v172, %v249
    %s251 = scalar_lea.vmem [#allocation2], 8
    %252 = vst [vmem:[%s251] sm:$0xff] %v250
    %v253 = vld [vmem:[#allocation2] sm:$0xff]
    %v254 = vld [vmem:[#allocation2 + $0x8] sm:$0xff]
    %v255 = vld [vmem:[%s5] sm:$0x1]
    %v257 = vlaneseq
    %v258 = vshrl.u32 %v257, 7
    %v259 = vsub.s32 0, %v258
    %v260 = vrot.slane %v255, %v259
    %v262 = vmul.f32 %v253, %v260
    %v263 = vmul.f32 %v254, %v260
    %v264 = vld [vmem:[%s6] sm:$0x1]
    %v266 = vlaneseq
    %v267 = vshrl.u32 %v266, 7
    %v268 = vsub.s32 0, %v267
    %v269 = vrot.slane %v264, %v268
    %v271 = vadd.f32 %v262, %v269
    %v272 = vadd.f32 %v263, %v269
    %v273 = vld [vmem:[#allocation3] sm:$0xff]
    %v274 = vld [vmem:[#allocation3 + $0x8] sm:$0xff]
    %v275 = vld [vmem:[#allocation3 + $0x10] sm:$0xff]
    %v276 = vld [vmem:[#allocation3 + $0x18] sm:$0xff]
    %v277 = vld [vmem:[#allocation3 + $0x20] sm:$0xff]
    %v278 = vld [vmem:[#allocation3 + $0x28] sm:$0xff]
    %v279 = vld [vmem:[#allocation3 + $0x30] sm:$0xff]
    %v280 = vld [vmem:[#allocation3 + $0x38] sm:$0xff]
    %v281 = vld [vmem:[#allocation3 + $0x40] sm:$0xff]
    %v282 = vld [vmem:[#allocation3 + $0x48] sm:$0xff]
    %v283 = vld [vmem:[#allocation3 + $0x50] sm:$0xff]
    %v284 = vld [vmem:[#allocation3 + $0x58] sm:$0xff]
    %v285 = vld [vmem:[#allocation3 + $0x60] sm:$0xff]
    %v286 = vld [vmem:[#allocation3 + $0x68] sm:$0xff]
    %v287 = vld [vmem:[#allocation3 + $0x70] sm:$0xff]
    %v288 = vld [vmem:[#allocation3 + $0x78] sm:$0xff]
    %v289 = vld [vmem:[%s8] sm:$0x1]
    %v291 = vlaneseq
    %v292 = vshrl.u32 %v291, 7
    %v293 = vsub.s32 0, %v292
    %v294 = vrot.slane %v289, %v293
    %296 = vmatprep.subr.mxu0 0.0
    %297 = vmatpush1.msra.mxu0 %v273
    %298 = vmatprep.subr.mxu0 0.0
    %299 = vmatpush1.msra.mxu0 %v274
    %300 = vmatprep.subr.mxu0 0.0
    %301 = vmatpush1.msra.mxu0 %v275
    %302 = vmatprep.subr.mxu0 0.0
    %303 = vmatpush1.msra.mxu0 %v276
    %304 = vmatprep.subr.mxu0 0.0
    %305 = vmatpush1.msra.mxu0 %v277
    %306 = vmatprep.subr.mxu0 0.0
    %307 = vmatpush1.msra.mxu0 %v278
    %308 = vmatprep.subr.mxu0 0.0
    %309 = vmatpush1.msra.mxu0 %v279
    %310 = vmatprep.subr.mxu0 0.0
    %311 = vmatpush1.msra.mxu0 %v280
    %312 = vmatprep.subr.mxu0 0.0
    %313 = vmatpush1.msra.mxu0 %v281
    %314 = vmatprep.subr.mxu0 0.0
    %315 = vmatpush1.msra.mxu0 %v282
    %316 = vmatprep.subr.mxu0 0.0
    %317 = vmatpush1.msra.mxu0 %v283
    %318 = vmatprep.subr.mxu0 0.0
    %319 = vmatpush1.msra.mxu0 %v284
    %320 = vmatprep.subr.mxu0 0.0
    %321 = vmatpush1.msra.mxu0 %v285
    %322 = vmatprep.subr.mxu0 0.0
    %323 = vmatpush1.msra.mxu0 %v286
    %324 = vmatprep.subr.mxu0 0.0
    %325 = vmatpush1.msra.mxu0 %v287
    %326 = vmatprep.subr.mxu0 0.0
    %327 = vmatpush1.msra.mxu0 %v288
    %328 = vmatprep.subr.mxu0 0.0
    %329 = vmatpush1.msra.mxu0 0.0
    %330 = vmatprep.subr.mxu0 0.0
    %331 = vmatpush1.msra.mxu0 0.0
    %332 = vmatprep.subr.mxu0 0.0
    %333 = vmatpush1.msra.mxu0 0.0
    %334 = vmatprep.subr.mxu0 0.0
    %335 = vmatpush1.msra.mxu0 0.0
    %336 = vmatprep.subr.mxu0 0.0
    %337 = vmatpush1.msra.mxu0 0.0
    %338 = vmatprep.subr.mxu0 0.0
    %339 = vmatpush1.msra.mxu0 0.0
    %340 = vmatprep.subr.mxu0 0.0
    %341 = vmatpush1.msra.mxu0 0.0
    %342 = vmatprep.subr.mxu0 0.0
    %343 = vmatpush1.msra.mxu0 0.0
    %344 = vmatprep.subr.mxu0 0.0
    %345 = vmatpush1.msra.mxu0 0.0
    %346 = vmatprep.subr.mxu0 0.0
    %347 = vmatpush1.msra.mxu0 0.0
    %348 = vmatprep.subr.mxu0 0.0
    %349 = vmatpush1.msra.mxu0 0.0
    %350 = vmatprep.subr.mxu0 0.0
    %351 = vmatpush1.msra.mxu0 0.0
    %352 = vmatprep.subr.mxu0 0.0
    %353 = vmatpush1.msra.mxu0 0.0
    %354 = vmatprep.subr.mxu0 0.0
    %355 = vmatpush1.msra.mxu0 0.0
    %356 = vmatprep.subr.mxu0 0.0
    %357 = vmatpush1.msra.mxu0 0.0
    %358 = vmatprep.subr.mxu0 0.0
    %359 = vmatpush1.msra.mxu0 0.0
    %360 = vmatprep.mubr.f32.mxu0 0.0
    %361 = vmatmul.mubr.f32.gmra.mrb[0].mxu0 %v271
    %v362 = vpop.f32.mrb[0].mxu0
    %v363 = vadd.f32 %v294, %v362
    %v364 = vpop.f32.mrb[0].mxu0
    %365 = vmatprep.mubr.f32.mxu0 0.0
    %366 = vmatmul.mubr.f32.gmra.mrb[0].mxu0 %v272
    %v367 = vpop.f32.mrb[0].mxu0
    %v368 = vadd.f32 %v294, %v367
    %v369 = vpop.f32.mrb[0].mxu0
    %370 = vdwg.mxu0
    %v371 = vmul.f32 %v363, 0.5
    %v372 = vmul.f32 %v368, 0.5
    %v373 = vmul.f32 %v363, %v164
    %v374 = vmul.f32 %v368, %v164
    %v375 = verf.f32.pop %v373
    %v376 = verf.f32.pop %v374
    %v377 = vadd.f32 %v375, 1.0
    %v378 = vadd.f32 %v376, 1.0
    %v379 = vmul.f32 %v371, %v377
    %v380 = vmul.f32 %v372, %v378
    %v381 = vld [vmem:[#allocation6] sm:$0xff]
    %v382 = vld [vmem:[#allocation6 + $0x8] sm:$0xff]
    %v383 = vld [vmem:[#allocation6 + $0x10] sm:$0xff]
    %v384 = vld [vmem:[#allocation6 + $0x18] sm:$0xff]
    %v385 = vld [vmem:[#allocation6 + $0x20] sm:$0xff]
    %v386 = vld [vmem:[#allocation6 + $0x28] sm:$0xff]
    %v387 = vld [vmem:[#allocation6 + $0x30] sm:$0xff]
    %v388 = vld [vmem:[#allocation6 + $0x38] sm:$0xff]
    %v389 = vld [vmem:[#allocation6 + $0x40] sm:$0xff]
    %v390 = vld [vmem:[#allocation6 + $0x48] sm:$0xff]
    %v391 = vld [vmem:[#allocation6 + $0x50] sm:$0xff]
    %v392 = vld [vmem:[#allocation6 + $0x58] sm:$0xff]
    %v393 = vld [vmem:[#allocation6 + $0x60] sm:$0xff]
    %v394 = vld [vmem:[#allocation6 + $0x68] sm:$0xff]
    %v395 = vld [vmem:[#allocation6 + $0x70] sm:$0xff]
    %v396 = vld [vmem:[#allocation6 + $0x78] sm:$0xff]
    %v397 = vld [vmem:[%s10] sm:$0x1]
    %v399 = vlaneseq
    %v400 = vshrl.u32 %v399, 7
    %v401 = vsub.s32 0, %v400
    %v402 = vrot.slane %v397, %v401
    %404 = vmatprep.subr.mxu0 0.0
    %405 = vmatpush1.msra.mxu0 %v381
    %406 = vmatprep.subr.mxu0 0.0
    %407 = vmatpush1.msra.mxu0 %v382
    %408 = vmatprep.subr.mxu0 0.0
    %409 = vmatpush1.msra.mxu0 %v383
    %410 = vmatprep.subr.mxu0 0.0
    %411 = vmatpush1.msra.mxu0 %v384
    %412 = vmatprep.subr.mxu0 0.0
    %413 = vmatpush1.msra.mxu0 %v385
    %414 = vmatprep.subr.mxu0 0.0
    %415 = vmatpush1.msra.mxu0 %v386
    %416 = vmatprep.subr.mxu0 0.0
    %417 = vmatpush1.msra.mxu0 %v387
    %418 = vmatprep.subr.mxu0 0.0
    %419 = vmatpush1.msra.mxu0 %v388
    %420 = vmatprep.subr.mxu0 0.0
    %421 = vmatpush1.msra.mxu0 %v389
    %422 = vmatprep.subr.mxu0 0.0
    %423 = vmatpush1.msra.mxu0 %v390
    %424 = vmatprep.subr.mxu0 0.0
    %425 = vmatpush1.msra.mxu0 %v391
    %426 = vmatprep.subr.mxu0 0.0
    %427 = vmatpush1.msra.mxu0 %v392
    %428 = vmatprep.subr.mxu0 0.0
    %429 = vmatpush1.msra.mxu0 %v393
    %430 = vmatprep.subr.mxu0 0.0
    %431 = vmatpush1.msra.mxu0 %v394
    %432 = vmatprep.subr.mxu0 0.0
    %433 = vmatpush1.msra.mxu0 %v395
    %434 = vmatprep.subr.mxu0 0.0
    %435 = vmatpush1.msra.mxu0 %v396
    %436 = vmatprep.subr.mxu0 0.0
    %437 = vmatpush1.msra.mxu0 0.0
    %438 = vmatprep.subr.mxu0 0.0
    %439 = vmatpush1.msra.mxu0 0.0
    %440 = vmatprep.subr.mxu0 0.0
    %441 = vmatpush1.msra.mxu0 0.0
    %442 = vmatprep.subr.mxu0 0.0
    %443 = vmatpush1.msra.mxu0 0.0
    %444 = vmatprep.subr.mxu0 0.0
    %445 = vmatpush1.msra.mxu0 0.0
    %446 = vmatprep.subr.mxu0 0.0
    %447 = vmatpush1.msra.mxu0 0.0
    %448 = vmatprep.subr.mxu0 0.0
    %449 = vmatpush1.msra.mxu0 0.0
    %450 = vmatprep.subr.mxu0 0.0
    %451 = vmatpush1.msra.mxu0 0.0
    %452 = vmatprep.subr.mxu0 0.0
    %453 = vmatpush1.msra.mxu0 0.0
    %454 = vmatprep.subr.mxu0 0.0
    %455 = vmatpush1.msra.mxu0 0.0
    %456 = vmatprep.subr.mxu0 0.0
    %457 = vmatpush1.msra.mxu0 0.0
    %458 = vmatprep.subr.mxu0 0.0
    %459 = vmatpush1.msra.mxu0 0.0
    %460 = vmatprep.subr.mxu0 0.0
    %461 = vmatpush1.msra.mxu0 0.0
    %462 = vmatprep.subr.mxu0 0.0
    %463 = vmatpush1.msra.mxu0 0.0
    %464 = vmatprep.subr.mxu0 0.0
    %465 = vmatpush1.msra.mxu0 0.0
    %466 = vmatprep.subr.mxu0 0.0
    %467 = vmatpush1.msra.mxu0 0.0
    %468 = vmatprep.mubr.f32.mxu0 0.0
    %469 = vmatmul.mubr.f32.gmra.mrb[0].mxu0 %v379
    %v470 = vpop.f32.mrb[0].mxu0
    %v471 = vadd.f32 %v402, %v470
    %v472 = vpop.f32.mrb[0].mxu0
    %473 = vmatprep.mubr.f32.mxu0 0.0
    %474 = vmatmul.mubr.f32.gmra.mrb[0].mxu0 %v380
    %v475 = vpop.f32.mrb[0].mxu0
    %v476 = vadd.f32 %v402, %v475
    %v477 = vpop.f32.mrb[0].mxu0
    %478 = vdwg.mxu0
    %v479 = vadd.f32 %v253, %v471
    %v480 = vadd.f32 %v254, %v476
    %481 = vst [vmem:[#allocation8] sm:$0xff] %v479
    %482 = vst [vmem:[#allocation8 + $0x8] sm:$0xff] %v480
    // Predicated region
    $region54: #{tpu_custom_call.1} parent=1 // pred_check
      _
    $region55: #{tpu_custom_call.1} parent=1 // pred_check_branch
      %484 = sbr.rel (0) target = $region57
    $region56: #{tpu_custom_call.1} parent=1 // pred_region
      %s486 = ssub.s32 256, 256
      %487 = vsyncadd [#allocation5], %s486
      %s488 = sshll.u32 [#allocation8], 4
      %s489 = int_to_ptr.vmem [resolvable:$true] %s488
      %494 = dma.vmem_to_hbm [thread:$0]  %s489, 256, %s11, [#allocation5], 128, 128, 8
    $region57: #{tpu_custom_call.1} parent=1 // pred_fallthru
      _
    // Predicated region
    $region58: #{tpu_custom_call.1} parent=1 // pred_check
      _
    $region59: #{tpu_custom_call.1} parent=1 // pred_check_branch
      %496 = sbr.rel (0) target = $region61
    $region60: #{tpu_custom_call.1} parent=1 // pred_region
      %497 = dma.done [#allocation5], 256
    $region61: #{tpu_custom_call.1} parent=1 // pred_fallthru
      _
    %498 = vsyncpa [#allocation4], 1
    %499 = vsyncpa [#allocation7], 1
    %500 = vsyncpa [#allocation5], 1

</llo_original>
